<compile_context>
chip_gen: v6e
topology: v6e:2x2x1
jax: 0.10.0
libtpu: 0.0.40
codegen_flags: <defaults>
</compile_context>

<pallas_src>
import jax
import jax.numpy as jnp
import numpy as np
from jax.experimental import pallas as pl
from jax.experimental.pallas import tpu as pltpu

NEG_SLOPE = 0.01   # nn.LeakyReLU(negative_slope=0.01)
EPS = 1e-5         # nn.InstanceNorm3d default eps
VMEM_LIMIT = 32 * 1024 * 1024   # explicit scoped-VMEM limit (v5e default is 16 MiB)


def _round_up(a, b):
    return (a + b - 1) // b * b


# ----------------------------------------------------------------------------
# Pass 1: tiled im2col GEMM + per-tile InstanceNorm partial statistics
# ----------------------------------------------------------------------------
def _conv_gemm_stats_kernel(p_ref, w_ref, out_ref, stat_ref, acc_ref):
    # p_ref   : (1, tm, tk)  bf16  im2col patch tile
    # w_ref   : (tk, Cp)     bf16  weight tile
    # out_ref : (1, tm, Cp)  f32   pre-norm conv output tile
    # stat_ref: (1, 8,  Cp)  f32   row 0 = sum over tm rows, row 1 = sum of squares
    # acc_ref : (tm, Cp)     f32   accumulator, resident across the K axis
    k = pl.program_id(2)

    @pl.when(k == 0)
    def _():
        acc_ref[...] = jnp.zeros_like(acc_ref)

    acc_ref[...] += jnp.dot(p_ref[0], w_ref[...],
                            preferred_element_type=jnp.float32)

    @pl.when(k == pl.num_programs(2) - 1)
    def _():
        acc = acc_ref[...]
        out_ref[0] = acc
        s = jnp.sum(acc, axis=0, keepdims=True)           # (1, Cp)
        ss = jnp.sum(acc * acc, axis=0, keepdims=True)    # (1, Cp)
        row = jax.lax.broadcasted_iota(jnp.int32, (8, acc.shape[1]), 0)
        stat_ref[0] = jnp.where(row == 0, s, jnp.where(row == 1, ss, 0.0))


# ----------------------------------------------------------------------------
# Pass 2: element-wise InstanceNorm apply + LeakyReLU
# ----------------------------------------------------------------------------
def _norm_lrelu_kernel(x_ref, scale_ref, shift_ref, o_ref):
    # x_ref     : (1, tm, Cp) f32   pre-norm conv output tile
    # scale_ref : (1, 1,  Cp) f32   rstd per (n, c)
    # shift_ref : (1, 1,  Cp) f32   -mean * rstd per (n, c)
    # o_ref     : (1, tm, Cp) out dtype
    xn = x_ref[0] * scale_ref[0] + shift_ref[0]
    o_ref[0] = jnp.where(xn >= 0, xn, NEG_SLOPE * xn).astype(o_ref.dtype)


# ----------------------------------------------------------------------------
# JAX glue: im2col, upsampling, fused conv + InstanceNorm + LeakyReLU wrapper
# ----------------------------------------------------------------------------
def _im2col_3x3x3(x):
    # x: (N, D, H, W, C) -> (N, D*H*W, 27*C), zero padding of 1 on each side.
    # TODO(synk): form patches inside the kernel from a halo-slab DMA
    # (memory_space=pl.ANY) to avoid the 27x im2col HBM inflation.
    N, D, H, W, C = x.shape
    xp = jnp.pad(x, ((0, 0), (1, 1), (1, 1), (1, 1), (0, 0)))
    cols = []
    for kd in range(3):
        for kh in range(3):
            for kw in range(3):
                cols.append(xp[:, kd:kd + D, kh:kh + H, kw:kw + W, :])
    p = jnp.concatenate(cols, axis=-1)            # (N, D, H, W, 27*C)
    return p.reshape(N, D * H * W, 27 * C)


def conv3_in_lrelu(x, w, *, tm=256, tk=512, out_dtype=jnp.bfloat16):
    """Fused Conv3d(k=3, pad=1, no bias) + InstanceNorm3d + LeakyReLU(0.01).

    x: (N, D, H, W, Cin);  w: (3, 3, 3, Cin, Cout)  ->  (N, D, H, W, Cout)
    """
    N, D, H, W, Cin = x.shape
    Cout = w.shape[-1]
    DHW = D * H * W
    K = 27 * Cin

    # Lane-dense padded sizes (zero padding is exact: padded K columns hit
    # zero weight rows, padded DHW rows produce exact zeros that contribute
    # nothing to the sum/sumsq, which are divided by the true DHW).
    Cp = _round_up(Cout, 128)
    tm = min(tm, _round_up(DHW, 16))
    DHWp = _round_up(DHW, tm)
    tk = min(tk, _round_up(K, 128))
    Kp = _round_up(K, tk)
    num_m = DHWp // tm
    num_k = Kp // tk

    patches = _im2col_3x3x3(x.astype(jnp.bfloat16))               # (N, DHW, K)
    patches = jnp.pad(patches, ((0, 0), (0, DHWp - DHW), (0, Kp - K)))
    wm = jnp.pad(w.reshape(K, Cout).astype(jnp.bfloat16),
                 ((0, Kp - K), (0, Cp - Cout)))                    # (Kp, Cp)

    conv_out, stats = pl.pallas_call(
        _conv_gemm_stats_kernel,
        out_shape=(jax.ShapeDtypeStruct((N, DHWp, Cp), jnp.float32),
                   jax.ShapeDtypeStruct((N, num_m * 8, Cp), jnp.float32)),
        grid_spec=pltpu.PrefetchScalarGridSpec(
            num_scalar_prefetch=0,
            grid=(N, num_m, num_k),
            in_specs=[
                pl.BlockSpec((1, tm, tk), lambda n, m, k: (n, m, k)),
                pl.BlockSpec((tk, Cp), lambda n, m, k: (k, 0)),
            ],
            out_specs=[
                pl.BlockSpec((1, tm, Cp), lambda n, m, k: (n, m, 0)),
                pl.BlockSpec((1, 8, Cp), lambda n, m, k: (n, m, 0)),
            ],
            scratch_shapes=[pltpu.VMEM((tm, Cp), jnp.float32)],
        ),
        compiler_params=pltpu.CompilerParams(
            dimension_semantics=("parallel", "parallel", "arbitrary"),
            vmem_limit_bytes=VMEM_LIMIT),
    )(patches, wm)

    # Combine per-tile partial statistics (tiny (N, num_m, Cp) reduction).
    stats = stats.reshape(N, num_m, 8, Cp)
    s = jnp.sum(stats[:, :, 0, :], axis=1)                        # (N, Cp)
    ss = jnp.sum(stats[:, :, 1, :], axis=1)
    mean = s / DHW
    var = jnp.maximum(ss / DHW - mean * mean, 0.0)                # biased var (f32)
    rstd = jax.lax.rsqrt(var + EPS)
    scale = rstd[:, None, :]                                      # (N, 1, Cp)
    shift = (-mean * rstd)[:, None, :]

    out = pl.pallas_call(
        _norm_lrelu_kernel,
        out_shape=jax.ShapeDtypeStruct((N, DHWp, Cp), out_dtype),
        grid_spec=pltpu.PrefetchScalarGridSpec(
            num_scalar_prefetch=0,
            grid=(N, num_m),
            in_specs=[
                pl.BlockSpec((1, tm, Cp), lambda n, m: (n, m, 0)),
                pl.BlockSpec((1, 1, Cp), lambda n, m: (n, 0, 0)),
                pl.BlockSpec((1, 1, Cp), lambda n, m: (n, 0, 0)),
            ],
            out_specs=pl.BlockSpec((1, tm, Cp), lambda n, m: (n, m, 0)),
        ),
        compiler_params=pltpu.CompilerParams(
            dimension_semantics=("parallel", "parallel"),
            vmem_limit_bytes=VMEM_LIMIT),
    )(conv_out, scale, shift)

    return out[:, :DHW, :Cout].reshape(N, D, H, W, Cout)


def _upsample2x_linear_axis(x, axis):
    # PyTorch align_corners=True mapping: src = i * (n - 1) / (2n - 1).
    n = x.shape[axis]
    m = 2 * n
    if n == 1:
        return jnp.concatenate([x, x], axis=axis)
    src = jnp.arange(m, dtype=jnp.float32) * (n - 1) / (m - 1)
    lo = jnp.floor(src).astype(jnp.int32)
    hi = jnp.minimum(lo + 1, n - 1)
    frac = src - lo.astype(jnp.float32)
    shape = [1] * x.ndim
    shape[axis] = m
    frac = frac.reshape(shape)
    return (jnp.take(x, lo, axis=axis) * (1.0 - frac)
            + jnp.take(x, hi, axis=axis) * frac)


def trilinear_upsample2x_align_corners(x):
    # Separable lerp kept in plain JAX (memory-bound gather glue).
    # TODO(synk): fold the lerp weights into conv-1 patch formation so the
    # upsampled tensor / concat are never materialized in HBM.
    for ax in (1, 2, 3):
        x = _upsample2x_linear_axis(x, ax)
    return x


class DecoderLayerPallas:
    """JAX/Pallas port of models/Unet.py:DecoderLayer."""

    def __init__(self, in_channels, mid_channels, out_channels, bias, key,
                 tm=256, tk=512):
        k1, k2, k3, k4 = jax.random.split(key, 4)
        self.tm, self.tk = tm, tk

        def init_w(k, cin, cout):
            bound = 1.0 / np.sqrt(cin * 27)
            # stored (kD, kH, kW, Cin, Cout) to match the im2col column order
            return jax.random.uniform(k, (3, 3, 3, cin, cout),
                                      jnp.float32, -bound, bound)

        def init_b(k, cin, cout):
            bound = 1.0 / np.sqrt(cin * 27)
            return jax.random.uniform(k, (cout,), jnp.float32, -bound, bound)

        self.w1 = init_w(k1, in_channels, mid_channels)
        self.b1 = (init_b(k2, in_channels, mid_channels)
                   if bias else jnp.zeros((mid_channels,), jnp.float32))
        self.w2 = init_w(k3, mid_channels, out_channels)
        self.b2 = (init_b(k4, mid_channels, out_channels)
                   if bias else jnp.zeros((out_channels,), jnp.float32))

        self._forward = jax.jit(self._forward_impl)

    # ---- Pallas forward -----------------------------------------------------
    def _forward_impl(self, x, y):
        # x: (N, Cx, D, H, W),  y: (N, Cy, 2D, 2H, 2W)   (NCDHW like PyTorch)
        x = jnp.transpose(x, (0, 2, 3, 4, 1))             # -> NDHWC
        y = jnp.transpose(y, (0, 2, 3, 4, 1))
        x = trilinear_upsample2x_align_corners(x)
        out = jnp.concatenate([x, y], axis=-1)            # cat along channels
        # Conv bias omitted in the kernel path: non-affine InstanceNorm3d mean
        # subtraction cancels a per-channel bias exactly (output unchanged).
        out = conv3_in_lrelu(out, self.w1, tm=self.tm, tk=self.tk,
                             out_dtype=jnp.bfloat16)      # bf16 feeds conv-2
        out = conv3_in_lrelu(out, self.w2, tm=self.tm, tk=self.tk,
                             out_dtype=jnp.float32)
        return jnp.transpose(out, (0, 4, 1, 2, 3))        # back to NCDHW

    def __call__(self, x, y):
        return self._forward(x, y)

    # ---- pure-JAX reference (f32, HIGHEST precision, keeps the bias) --------
    def _ref_block(self, x, w, b):
        y = jax.lax.conv_general_dilated(
            x, w, window_strides=(1, 1, 1),
            padding=[(1, 1), (1, 1), (1, 1)],
            dimension_numbers=('NDHWC', 'DHWIO', 'NDHWC'),
            precision=jax.lax.Precision.HIGHEST)
        y = y + b
        mean = jnp.mean(y, axis=(1, 2, 3), keepdims=True)
        var = jnp.var(y, axis=(1, 2, 3), keepdims=True)
        y = (y - mean) * jax.lax.rsqrt(var + EPS)
        return jnp.where(y >= 0, y, NEG_SLOPE * y)

    def reference(self, x, y):
        x = jnp.transpose(x, (0, 2, 3, 4, 1))
        y = jnp.transpose(y, (0, 2, 3, 4, 1))
        x = trilinear_upsample2x_align_corners(x)
        out = jnp.concatenate([x, y], axis=-1)
        out = self._ref_block(out, self.w1, self.b1)
        out = self._ref_block(out, self.w2, self.b2)
        return jnp.transpose(out, (0, 4, 1, 2, 3))


if __name__ == "__main__":
    key = jax.random.PRNGKey(0)
    kx, ky, kp = jax.random.split(key, 3)

    # Small decoder shapes: low-res feature map x, skip connection y at 2x res.
    N, Cx, Cy = 2, 4, 4
    D = H = W = 4
    x = jax.random.normal(kx, (N, Cx, D, H, W), jnp.float32)
    y = jax.random.normal(ky, (N, Cy, 2 * D, 2 * H, 2 * W), jnp.float32)

    in_channels = Cx + Cy          # channels after upsample + concat
    mid_channels = 8
    out_channels = 8

    # tk=128 so the toy shapes (K = 216 -> padded 256) exercise the multi-step
    # K accumulation path; real decoder shapes would use the larger defaults.
    layer = DecoderLayerPallas(in_channels, mid_channels, out_channels,
                               bias=True, key=kp, tm=256, tk=128)

    out = jax.block_until_ready(layer(x, y))
    ref = jax.block_until_ready(layer.reference(x, y))

    assert out.shape == (N, out_channels, 2 * D, 2 * H, 2 * W), out.shape
    np.testing.assert_allclose(np.asarray(out), np.asarray(ref),
                               atol=5e-2, rtol=5e-2)
    print("KERNEL_OK")
</pallas_src>

<mosaic_0001>
module attributes {stable_mosaic.version = 11 : i64} {
  func.func @_conv_gemm_stats_kernel(%arg0: i32, %arg1: i32, %arg2: i32, %arg3: memref<1x256x128xbf16, #tpu.memory_space<vmem>>, %arg4: memref<128x128xbf16, #tpu.memory_space<vmem>>, %arg5: memref<1x256x128xf32, #tpu.memory_space<vmem>>, %arg6: memref<1x8x128xf32, #tpu.memory_space<vmem>>, %arg7: memref<256x128xf32, #tpu.memory_space<vmem>>) attributes {dimension_semantics = [#tpu.dimension_semantics<parallel>, #tpu.dimension_semantics<parallel>, #tpu.dimension_semantics<arbitrary>], iteration_bounds = array<i64: 2, 2, 2>, scalar_prefetch = 0 : i64, scratch_operands = 1 : i64, tpu.core_type = #tpu.core_type<tc>, window_params = [{transform_indices = @transform_0, window_bounds = array<i64: 1, 256, 128>}, {transform_indices = @transform_1, window_bounds = array<i64: 128, 128>}, {transform_indices = @transform_2, window_bounds = array<i64: 1, 256, 128>}, {transform_indices = @transform_3, window_bounds = array<i64: 1, 8, 128>}]} {
    %c0_i32 = arith.constant 0 : i32
    %0 = arith.cmpi eq, %arg2, %c0_i32 : i32
    %1 = arith.extui %0 : i1 to i32
    %c0_i32_0 = arith.constant 0 : i32
    %2 = arith.cmpi ne, %1, %c0_i32_0 : i32
    scf.if %2 {
      %cst_10 = arith.constant 0.000000e+00 : f32
      %13 = vector.broadcast %cst_10 : f32 to vector<256x128xf32>
      %c0_11 = arith.constant 0 : index
      %c0_12 = arith.constant 0 : index
      %14 = vector.load %arg7[%c0_11, %c0_12] : memref<256x128xf32, #tpu.memory_space<vmem>>, vector<256x128xf32>
      tpu.vector_store %arg7[%c0_11, %c0_12], %13 {strides = array<i32>} : memref<256x128xf32, #tpu.memory_space<vmem>>, vector<256x128xf32>,
    } else {
    }
    %c0 = arith.constant 0 : index
    %c0_1 = arith.constant 0 : index
    %3 = vector.load %arg7[%c0, %c0_1] : memref<256x128xf32, #tpu.memory_space<vmem>>, vector<256x128xf32>
    %c0_2 = arith.constant 0 : index
    %c0_3 = arith.constant 0 : index
    %c0_4 = arith.constant 0 : index
    %4 = vector.load %arg3[%c0_2, %c0_3, %c0_4] : memref<1x256x128xbf16, #tpu.memory_space<vmem>>, vector<1x256x128xbf16>
    %5 = vector.shape_cast %4 : vector<1x256x128xbf16> to vector<256x128xbf16>
    %c0_5 = arith.constant 0 : index
    %c0_6 = arith.constant 0 : index
    %6 = vector.load %arg4[%c0_5, %c0_6] : memref<128x128xbf16, #tpu.memory_space<vmem>>, vector<128x128xbf16>
    %cst = arith.constant dense<0.000000e+00> : vector<256x128xf32>
    %7 = tpu.matmul %5, %6, %cst {dimension_numbers = #tpu.dot_dimension_numbers<[1], [0], [0], [1], [0, 0, 1, 1], [], []>} : vector<256x128xbf16>, vector<128x128xbf16>, vector<256x128xf32> -> vector<256x128xf32>
    %8 = arith.addf %3, %7 : vector<256x128xf32>
    %c0_7 = arith.constant 0 : index
    %c0_8 = arith.constant 0 : index
    %9 = vector.load %arg7[%c0_7, %c0_8] : memref<256x128xf32, #tpu.memory_space<vmem>>, vector<256x128xf32>
    tpu.vector_store %arg7[%c0_7, %c0_8], %8 {strides = array<i32>} : memref<256x128xf32, #tpu.memory_space<vmem>>, vector<256x128xf32>,
    %c1_i32 = arith.constant 1 : i32
    %10 = arith.cmpi eq, %arg2, %c1_i32 : i32
    %11 = arith.extui %10 : i1 to i32
    %c0_i32_9 = arith.constant 0 : i32
    %12 = arith.cmpi ne, %11, %c0_i32_9 : i32
    scf.if %12 {
      %c0_10 = arith.constant 0 : index
      %c0_11 = arith.constant 0 : index
      %13 = vector.load %arg7[%c0_10, %c0_11] : memref<256x128xf32, #tpu.memory_space<vmem>>, vector<256x128xf32>
      %c0_12 = arith.constant 0 : index
      %c0_13 = arith.constant 0 : index
      %c0_14 = arith.constant 0 : index
      %14 = vector.load %arg5[%c0_12, %c0_13, %c0_14] : memref<1x256x128xf32, #tpu.memory_space<vmem>>, vector<1x256x128xf32>
      %15 = vector.shape_cast %14 : vector<1x256x128xf32> to vector<256x128xf32>
      %16 = vector.shape_cast %13 : vector<256x128xf32> to vector<1x256x128xf32>
      tpu.vector_store %arg5[%c0_12, %c0_13, %c0_14], %16 {strides = array<i32>} : memref<1x256x128xf32, #tpu.memory_space<vmem>>, vector<1x256x128xf32>,
      %cst_15 = arith.constant dense<0.000000e+00> : vector<128xf32>
      %17 = vector.multi_reduction <add>, %13, %cst_15 [0] : vector<256x128xf32> to vector<128xf32>
      %18 = vector.shape_cast %17 : vector<128xf32> to vector<1x128xf32>
      %19 = arith.mulf %13, %13 : vector<256x128xf32>
      %cst_16 = arith.constant dense<0.000000e+00> : vector<128xf32>
      %20 = vector.multi_reduction <add>, %19, %cst_16 [0] : vector<256x128xf32> to vector<128xf32>
      %21 = vector.shape_cast %20 : vector<128xf32> to vector<1x128xf32>
      %22 = tpu.iota {dimensions = array<i32: 0>} : vector<8x128xi32>
      %c0_i32_17 = arith.constant 0 : i32
      %23 = vector.broadcast %c0_i32_17 : i32 to vector<8x128xi32>
      %24 = arith.cmpi eq, %22, %23 : vector<8x128xi32>
      %c1_i32_18 = arith.constant 1 : i32
      %25 = vector.broadcast %c1_i32_18 : i32 to vector<8x128xi32>
      %26 = arith.cmpi eq, %22, %25 : vector<8x128xi32>
      %cst_19 = arith.constant 0.000000e+00 : f32
      %27 = vector.shape_cast %21 : vector<1x128xf32> to vector<1x128xf32>
      %28 = vector.broadcast %27 : vector<1x128xf32> to vector<8x128xf32>
      %29 = vector.broadcast %cst_19 : f32 to vector<8x128xf32>
      %30 = arith.select %26, %28, %29 : vector<8x128xi1>, vector<8x128xf32>
      %31 = vector.shape_cast %18 : vector<1x128xf32> to vector<1x128xf32>
      %32 = vector.broadcast %31 : vector<1x128xf32> to vector<8x128xf32>
      %33 = arith.select %24, %32, %30 : vector<8x128xi1>, vector<8x128xf32>
      %c0_20 = arith.constant 0 : index
      %c0_21 = arith.constant 0 : index
      %c0_22 = arith.constant 0 : index
      %34 = vector.load %arg6[%c0_20, %c0_21, %c0_22] : memref<1x8x128xf32, #tpu.memory_space<vmem>>, vector<1x8x128xf32>
      %35 = vector.shape_cast %34 : vector<1x8x128xf32> to vector<8x128xf32>
      %36 = vector.shape_cast %33 : vector<8x128xf32> to vector<1x8x128xf32>
      tpu.vector_store %arg6[%c0_20, %c0_21, %c0_22], %36 {strides = array<i32>} : memref<1x8x128xf32, #tpu.memory_space<vmem>>, vector<1x8x128xf32>,
    } else {
    }
    return
  }
  func.func @transform_0(%arg0: i32, %arg1: i32, %arg2: i32) -> (i32, i32, i32) {
    %c0_i32 = arith.constant 0 : i32
    return %arg0, %arg1, %arg2 : i32, i32, i32
  }
  func.func @transform_1(%arg0: i32, %arg1: i32, %arg2: i32) -> (i32, i32) {
    %c0_i32 = arith.constant 0 : i32
    %c0_i32_0 = arith.constant 0 : i32
    return %arg2, %c0_i32 : i32, i32
  }
  func.func @transform_2(%arg0: i32, %arg1: i32, %arg2: i32) -> (i32, i32, i32) {
    %c0_i32 = arith.constant 0 : i32
    %c0_i32_0 = arith.constant 0 : i32
    return %arg0, %arg1, %c0_i32 : i32, i32, i32
  }
  func.func @transform_3(%arg0: i32, %arg1: i32, %arg2: i32) -> (i32, i32, i32) {
    %c0_i32 = arith.constant 0 : i32
    %c0_i32_0 = arith.constant 0 : i32
    return %arg0, %arg1, %c0_i32 : i32, i32, i32
  }
}

module attributes {stable_mosaic.version = 11 : i64} {
  func.func @_norm_lrelu_kernel(%arg0: i32, %arg1: i32, %arg2: memref<1x256x128xf32, #tpu.memory_space<vmem>>, %arg3: memref<1x1x128xf32, #tpu.memory_space<vmem>>, %arg4: memref<1x1x128xf32, #tpu.memory_space<vmem>>, %arg5: memref<1x256x128xbf16, #tpu.memory_space<vmem>>) attributes {dimension_semantics = [#tpu.dimension_semantics<parallel>, #tpu.dimension_semantics<parallel>], iteration_bounds = array<i64: 2, 2>, scalar_prefetch = 0 : i64, scratch_operands = 0 : i64, tpu.core_type = #tpu.core_type<tc>, window_params = [{transform_indices = @transform_0, window_bounds = array<i64: 1, 256, 128>}, {transform_indices = @transform_1, window_bounds = array<i64: 1, 1, 128>}, {transform_indices = @transform_2, window_bounds = array<i64: 1, 1, 128>}, {transform_indices = @transform_3, window_bounds = array<i64: 1, 256, 128>}]} {
    %c0 = arith.constant 0 : index
    %c0_0 = arith.constant 0 : index
    %c0_1 = arith.constant 0 : index
    %0 = vector.load %arg2[%c0, %c0_0, %c0_1] : memref<1x256x128xf32, #tpu.memory_space<vmem>>, vector<1x256x128xf32>
    %1 = vector.shape_cast %0 : vector<1x256x128xf32> to vector<256x128xf32>
    %c0_2 = arith.constant 0 : index
    %c0_3 = arith.constant 0 : index
    %c0_4 = arith.constant 0 : index
    %2 = vector.load %arg3[%c0_2, %c0_3, %c0_4] : memref<1x1x128xf32, #tpu.memory_space<vmem>>, vector<1x1x128xf32>
    %3 = vector.shape_cast %2 : vector<1x1x128xf32> to vector<1x128xf32>
    %4 = vector.broadcast %3 : vector<1x128xf32> to vector<256x128xf32>
    %5 = arith.mulf %1, %4 : vector<256x128xf32>
    %c0_5 = arith.constant 0 : index
    %c0_6 = arith.constant 0 : index
    %c0_7 = arith.constant 0 : index
    %6 = vector.load %arg4[%c0_5, %c0_6, %c0_7] : memref<1x1x128xf32, #tpu.memory_space<vmem>>, vector<1x1x128xf32>
    %7 = vector.shape_cast %6 : vector<1x1x128xf32> to vector<1x128xf32>
    %8 = vector.broadcast %7 : vector<1x128xf32> to vector<256x128xf32>
    %9 = arith.addf %5, %8 : vector<256x128xf32>
    %cst = arith.constant 0.000000e+00 : f32
    %10 = vector.broadcast %cst : f32 to vector<256x128xf32>
    %11 = arith.cmpf oge, %9, %10 : vector<256x128xf32>
    %cst_8 = arith.constant 0.00999999977 : f32
    %12 = vector.broadcast %cst_8 : f32 to vector<256x128xf32>
    %13 = arith.mulf %12, %9 : vector<256x128xf32>
    %14 = arith.select %11, %9, %13 : vector<256x128xi1>, vector<256x128xf32>
    %15 = arith.truncf %14 : vector<256x128xf32> to vector<256x128xbf16>
    %c0_9 = arith.constant 0 : index
    %c0_10 = arith.constant 0 : index
    %c0_11 = arith.constant 0 : index
    %16 = vector.load %arg5[%c0_9, %c0_10, %c0_11] : memref<1x256x128xbf16, #tpu.memory_space<vmem>>, vector<1x256x128xbf16>
    %17 = vector.shape_cast %16 : vector<1x256x128xbf16> to vector<256x128xbf16>
    %18 = vector.shape_cast %15 : vector<256x128xbf16> to vector<1x256x128xbf16>
    tpu.vector_store %arg5[%c0_9, %c0_10, %c0_11], %18 {strides = array<i32>} : memref<1x256x128xbf16, #tpu.memory_space<vmem>>, vector<1x256x128xbf16>,
    return
  }
  func.func @transform_0(%arg0: i32, %arg1: i32) -> (i32, i32, i32) {
    %c0_i32 = arith.constant 0 : i32
    %c0_i32_0 = arith.constant 0 : i32
    return %arg0, %arg1, %c0_i32 : i32, i32, i32
  }
  func.func @transform_1(%arg0: i32, %arg1: i32) -> (i32, i32, i32) {
    %c0_i32 = arith.constant 0 : i32
    %c0_i32_0 = arith.constant 0 : i32
    %c0_i32_1 = arith.constant 0 : i32
    return %arg0, %c0_i32, %c0_i32_0 : i32, i32, i32
  }
  func.func @transform_2(%arg0: i32, %arg1: i32) -> (i32, i32, i32) {
    %c0_i32 = arith.constant 0 : i32
    %c0_i32_0 = arith.constant 0 : i32
    %c0_i32_1 = arith.constant 0 : i32
    return %arg0, %c0_i32, %c0_i32_0 : i32, i32, i32
  }
  func.func @transform_3(%arg0: i32, %arg1: i32) -> (i32, i32, i32) {
    %c0_i32 = arith.constant 0 : i32
    %c0_i32_0 = arith.constant 0 : i32
    return %arg0, %arg1, %c0_i32 : i32, i32, i32
  }
}

module attributes {stable_mosaic.version = 11 : i64} {
  func.func @_norm_lrelu_kernel(%arg0: i32, %arg1: i32, %arg2: memref<1x256x128xf32, #tpu.memory_space<vmem>>, %arg3: memref<1x1x128xf32, #tpu.memory_space<vmem>>, %arg4: memref<1x1x128xf32, #tpu.memory_space<vmem>>, %arg5: memref<1x256x128xf32, #tpu.memory_space<vmem>>) attributes {dimension_semantics = [#tpu.dimension_semantics<parallel>, #tpu.dimension_semantics<parallel>], iteration_bounds = array<i64: 2, 2>, scalar_prefetch = 0 : i64, scratch_operands = 0 : i64, tpu.core_type = #tpu.core_type<tc>, window_params = [{transform_indices = @transform_0, window_bounds = array<i64: 1, 256, 128>}, {transform_indices = @transform_1, window_bounds = array<i64: 1, 1, 128>}, {transform_indices = @transform_2, window_bounds = array<i64: 1, 1, 128>}, {transform_indices = @transform_3, window_bounds = array<i64: 1, 256, 128>}]} {
    %c0 = arith.constant 0 : index
    %c0_0 = arith.constant 0 : index
    %c0_1 = arith.constant 0 : index
    %0 = vector.load %arg2[%c0, %c0_0, %c0_1] : memref<1x256x128xf32, #tpu.memory_space<vmem>>, vector<1x256x128xf32>
    %1 = vector.shape_cast %0 : vector<1x256x128xf32> to vector<256x128xf32>
    %c0_2 = arith.constant 0 : index
    %c0_3 = arith.constant 0 : index
    %c0_4 = arith.constant 0 : index
    %2 = vector.load %arg3[%c0_2, %c0_3, %c0_4] : memref<1x1x128xf32, #tpu.memory_space<vmem>>, vector<1x1x128xf32>
    %3 = vector.shape_cast %2 : vector<1x1x128xf32> to vector<1x128xf32>
    %4 = vector.broadcast %3 : vector<1x128xf32> to vector<256x128xf32>
    %5 = arith.mulf %1, %4 : vector<256x128xf32>
    %c0_5 = arith.constant 0 : index
    %c0_6 = arith.constant 0 : index
    %c0_7 = arith.constant 0 : index
    %6 = vector.load %arg4[%c0_5, %c0_6, %c0_7] : memref<1x1x128xf32, #tpu.memory_space<vmem>>, vector<1x1x128xf32>
    %7 = vector.shape_cast %6 : vector<1x1x128xf32> to vector<1x128xf32>
    %8 = vector.broadcast %7 : vector<1x128xf32> to vector<256x128xf32>
    %9 = arith.addf %5, %8 : vector<256x128xf32>
    %cst = arith.constant 0.000000e+00 : f32
    %10 = vector.broadcast %cst : f32 to vector<256x128xf32>
    %11 = arith.cmpf oge, %9, %10 : vector<256x128xf32>
    %cst_8 = arith.constant 0.00999999977 : f32
    %12 = vector.broadcast %cst_8 : f32 to vector<256x128xf32>
    %13 = arith.mulf %12, %9 : vector<256x128xf32>
    %14 = arith.select %11, %9, %13 : vector<256x128xi1>, vector<256x128xf32>
    %c0_9 = arith.constant 0 : index
    %c0_10 = arith.constant 0 : index
    %c0_11 = arith.constant 0 : index
    %15 = vector.load %arg5[%c0_9, %c0_10, %c0_11] : memref<1x256x128xf32, #tpu.memory_space<vmem>>, vector<1x256x128xf32>
    %16 = vector.shape_cast %15 : vector<1x256x128xf32> to vector<256x128xf32>
    %17 = vector.shape_cast %14 : vector<256x128xf32> to vector<1x256x128xf32>
    tpu.vector_store %arg5[%c0_9, %c0_10, %c0_11], %17 {strides = array<i32>} : memref<1x256x128xf32, #tpu.memory_space<vmem>>, vector<1x256x128xf32>,
    return
  }
  func.func @transform_0(%arg0: i32, %arg1: i32) -> (i32, i32, i32) {
    %c0_i32 = arith.constant 0 : i32
    %c0_i32_0 = arith.constant 0 : i32
    return %arg0, %arg1, %c0_i32 : i32, i32, i32
  }
  func.func @transform_1(%arg0: i32, %arg1: i32) -> (i32, i32, i32) {
    %c0_i32 = arith.constant 0 : i32
    %c0_i32_0 = arith.constant 0 : i32
    %c0_i32_1 = arith.constant 0 : i32
    return %arg0, %c0_i32, %c0_i32_0 : i32, i32, i32
  }
  func.func @transform_2(%arg0: i32, %arg1: i32) -> (i32, i32, i32) {
    %c0_i32 = arith.constant 0 : i32
    %c0_i32_0 = arith.constant 0 : i32
    %c0_i32_1 = arith.constant 0 : i32
    return %arg0, %c0_i32, %c0_i32_0 : i32, i32, i32
  }
  func.func @transform_3(%arg0: i32, %arg1: i32) -> (i32, i32, i32) {
    %c0_i32 = arith.constant 0 : i32
    %c0_i32_0 = arith.constant 0 : i32
    return %arg0, %arg1, %c0_i32 : i32, i32, i32
  }
}

</mosaic_0001>

<llo_original>
// kernel: _forward_impl.4
$region0: #{_forward_impl.4}
  #allocation0 [shape = 'u32[]', space=smem, size = 0x4, offset = 0x4, fixed_abs, tag = 'smem constant byte address 0x4 - core index']
  #allocation1 [shape = 'u32[144,128]{1,0:T(1,128)}', space=vmem, size = 0x12000, scoped, tag = 'internal scratch']
  #allocation2 [shape = 'f32[256,128]{1,0:T(8,128)}', space=vmem, size = 0x20000, scoped, tag = 'scratch operand']
  %s0 = inlined_call_operand.vmem [shape: bf16[2,512,256], index: 0, kind: input, shape index: {}]
  %s1 = inlined_call_operand.vmem [shape: bf16[256,128], index: 1, kind: input, shape index: {}]
  %s2 = inlined_call_operand.vmem [shape: f32[2,512,128], index: 2, kind: output, shape index: {0}]
  %s3 = inlined_call_operand.vmem [shape: f32[2,16,128], index: 3, kind: output, shape index: {1}]
  %4 = xla_tuple %s2, %s3
  %s5 = sld [smem:[#allocation0]]
  $region98: #{_forward_impl.4} parent=0
    _
  %s7 = ssub.s32 1, %s5
  %s8 = scalar_select 0, %s7, %s5
  $region1: #{_forward_impl.4} parent=0
    #allocation3 [shape = 'u8[131072]{0}', space=vmem, size = 0x20000, scoped, tag = 'input window, operand 0']
    loop: start=0, step=1, limit=10
    $region2: #{_forward_impl.4} parent=1 // loop_pre_header
      _
    $region3: #{_forward_impl.4} parent=1 // loop_header
      %s10 = sphi 0, %s14
      %p11 = scmp.ge.s32.totalorder %s10, 10
      %s17 = sphi 0, %s36
      %s18 = sphi 0, %s32
      %s19 = sphi 0, %s28
      %s20 = sphi 0, %s17
      %s21 = sphi 0, %s18
      %s22 = sphi 0, %s19
      %s23 = sphi 0, %s20
      %s24 = sphi 0, %s21
      %s25 = sphi 0, %s22
      %s43 = sphi 0, %s45
      %s46 = sphi 0, %s43
      %s47 = sphi 0, %s46
      %s63 = sphi 0, %s47
      %s69 = sphi 0, %s71
      %s72 = sphi 0, %s69
      %s73 = sphi 0, %s72
      %s89 = sphi 0, %s73
      %s97 = sphi 0, %s99
      %s100 = sphi 0, %s97
      %s101 = sphi 0, %s100
      %s117 = sphi 0, %s101
      %s125 = sphi 0, %s127
      %s128 = sphi 0, %s125
      %s129 = sphi 0, %s128
      %s145 = sphi 0, %s129
    $region4: #{_forward_impl.4} parent=1 // loop_header_branch
      %13 = sbr.rel (%p11) target = $region8
    $region5: #{_forward_impl.4} parent=1 // loop_body
      %s15 = ssub.s32 %s10, 1
      %s16 = ssub.s32 %s10, 2
      %s26 = sadd.s32 1, %s19
      %p27 = scmp.ge.s32.totalorder %s26, 2
      %s28 = scalar_select %p27, 0, %s26
      %s29 = sadd.s32 1, %s18
      %s30 = scalar_select %p27, %s29, %s18
      %p31 = scmp.ge.s32.totalorder %s30, 2
      %s32 = scalar_select %p31, 0, %s30
      %s33 = sadd.s32 1, %s17
      %s34 = scalar_select %p31, %s33, %s17
      %p35 = scmp.ge.s32.totalorder %s34, 2
      %s36 = scalar_select %p35, 0, %s34
      %s37 = ssub.s32 %s17, %s36
      %s38 = ssub.s32 %s18, %s32
      %s39 = sor.u32 %s37, %s38
      %s40 = ssub.s32 %s19, %s28
      %s41 = sor.u32 %s39, %s40
      %p42 = scmp.eq.s32.totalorder %s41, 0
      %s44 = sadd.s32 %s43, 1
      %s45 = scalar_select %p42, %s43, %s44
      %p48 = pneg %p42
      %p49 = scmp.eq.s32.totalorder %s10, 7
      %p50 = por %p48, %p49
      %p51 = scmp.ne.s32.totalorder %s43, %s46
      %p52 = scmp.eq.s32.totalorder %s10, 0
      %p53 = por %p51, %p52
      %p54 = scmp.ne.s32.totalorder %s43, %s46
      %p55 = scmp.eq.s32.totalorder %s15, 7
      %p56 = por %p54, %p55
      %p57 = scmp.ne.s32.totalorder %s46, %s47
      %p58 = scmp.eq.s32.totalorder %s15, 0
      %p59 = por %p57, %p58
      %p60 = scmp.ne.s32.totalorder %s46, %s47
      %p61 = scmp.eq.s32.totalorder %s16, 7
      %p62 = por %p60, %p61
      %p64 = scmp.ne.s32.totalorder %s47, %s63
      %p65 = scmp.eq.s32.totalorder %s16, 0
      %p66 = por %p64, %p65
      %s67 = ssub.s32 %s19, %s28
      %p68 = scmp.eq.s32.totalorder %s67, 0
      %s70 = sadd.s32 %s69, 1
      %s71 = scalar_select %p68, %s69, %s70
      %p74 = pneg %p68
      %p75 = scmp.eq.s32.totalorder %s10, 7
      %p76 = por %p74, %p75
      %p77 = scmp.ne.s32.totalorder %s69, %s72
      %p78 = scmp.eq.s32.totalorder %s10, 0
      %p79 = por %p77, %p78
      %p80 = scmp.ne.s32.totalorder %s69, %s72
      %p81 = scmp.eq.s32.totalorder %s15, 7
      %p82 = por %p80, %p81
      %p83 = scmp.ne.s32.totalorder %s72, %s73
      %p84 = scmp.eq.s32.totalorder %s15, 0
      %p85 = por %p83, %p84
      %p86 = scmp.ne.s32.totalorder %s72, %s73
      %p87 = scmp.eq.s32.totalorder %s16, 7
      %p88 = por %p86, %p87
      %p90 = scmp.ne.s32.totalorder %s73, %s89
      %p91 = scmp.eq.s32.totalorder %s16, 0
      %p92 = por %p90, %p91
      %s93 = ssub.s32 %s17, %s36
      %s94 = ssub.s32 %s18, %s32
      %s95 = sor.u32 %s93, %s94
      %p96 = scmp.eq.s32.totalorder %s95, 0
      %s98 = sadd.s32 %s97, 1
      %s99 = scalar_select %p96, %s97, %s98
      %p102 = pneg %p96
      %p103 = scmp.eq.s32.totalorder %s10, 7
      %p104 = por %p102, %p103
      %p105 = scmp.ne.s32.totalorder %s97, %s100
      %p106 = scmp.eq.s32.totalorder %s10, 0
      %p107 = por %p105, %p106
      %p108 = scmp.ne.s32.totalorder %s97, %s100
      %p109 = scmp.eq.s32.totalorder %s15, 7
      %p110 = por %p108, %p109
      %p111 = scmp.ne.s32.totalorder %s100, %s101
      %p112 = scmp.eq.s32.totalorder %s15, 0
      %p113 = por %p111, %p112
      %p114 = scmp.ne.s32.totalorder %s100, %s101
      %p115 = scmp.eq.s32.totalorder %s16, 7
      %p116 = por %p114, %p115
      %p118 = scmp.ne.s32.totalorder %s101, %s117
      %p119 = scmp.eq.s32.totalorder %s16, 0
      %p120 = por %p118, %p119
      %s121 = ssub.s32 %s17, %s36
      %s122 = ssub.s32 %s18, %s32
      %s123 = sor.u32 %s121, %s122
      %p124 = scmp.eq.s32.totalorder %s123, 0
      %s126 = sadd.s32 %s125, 1
      %s127 = scalar_select %p124, %s125, %s126
      %p130 = pneg %p124
      %p131 = scmp.eq.s32.totalorder %s10, 7
      %p132 = por %p130, %p131
      %p133 = scmp.ne.s32.totalorder %s125, %s128
      %p134 = scmp.eq.s32.totalorder %s10, 0
      %p135 = por %p133, %p134
      %p136 = scmp.ne.s32.totalorder %s125, %s128
      %p137 = scmp.eq.s32.totalorder %s15, 7
      %p138 = por %p136, %p137
      %p139 = scmp.ne.s32.totalorder %s128, %s129
      %p140 = scmp.eq.s32.totalorder %s15, 0
      %p141 = por %p139, %p140
      %p142 = scmp.ne.s32.totalorder %s128, %s129
      %p143 = scmp.eq.s32.totalorder %s16, 7
      %p144 = por %p142, %p143
      %p146 = scmp.ne.s32.totalorder %s129, %s145
      %p147 = scmp.eq.s32.totalorder %s16, 0
      %p148 = por %p146, %p147
      %p149 = scmp.le.s32.totalorder 1, %s10
      %p150 = scmp.lt.s32.totalorder %s10, 9
      %p151 = pnand %p149, %p150
      %p152 = pneg %p151
      // Predicated region
      $region9: #{_forward_impl.4} parent=5 // pred_check
        _
      $region10: #{_forward_impl.4} parent=5 // pred_check_branch
        %154 = sbr.rel (%p151) target = $region12
      $region11: #{_forward_impl.4} parent=5 // pred_region
        %s155 = ssub.s32 %s10, 1
      $region12: #{_forward_impl.4} parent=5 // pred_fallthru
        _
      %p156 = scmp.lt.s32.totalorder %s10, 8
      // Predicated region
      $region13: #{_forward_impl.4} parent=5 // pred_check
        %p157 = pneg %p156
      $region14: #{_forward_impl.4} parent=5 // pred_check_branch
        %159 = sbr.rel (%p157) target = $region16
      $region15: #{_forward_impl.4} parent=5 // pred_region
        // Predicated region
        $region17: #{_forward_impl.4} parent=15 // pred_check
          %p160 = pneg %p53
        $region18: #{_forward_impl.4} parent=15 // pred_check_branch
          %162 = sbr.rel (%p160) target = $region20
        $region19: #{_forward_impl.4} parent=15 // pred_region
          %s163 = sand.u32 %s43, 1
          %s164 = sand.u32 %s43, 1
          %s165 = smul.addr %s164, 128
          %s166 = scalar_lea.vmem [#allocation3], %s165
          %s167 = smul.u32 32, %s18
          %s168 = smul.addr %s167, 2
          %s169 = sadd.s32 %s19, %s168
          %s170 = smul.addr %s17, 128
          %s171 = sadd.s32 %s169, %s170
          %s172 = smul.addr %s171, 4
          %s173 = scalar_lea.vmem %s0, %s172
          // Predicated region
          $region21: #{_forward_impl.4} parent=19 // pred_check
            _
          $region22: #{_forward_impl.4} parent=19 // pred_check_branch
            %175 = sbr.rel (0) target = $region24
          $region23: #{_forward_impl.4} parent=19 // pred_region
            // Predicated region
            $region25: #{_forward_impl.4} parent=23 // pred_check
              _
            $region26: #{_forward_impl.4} parent=23 // pred_check_branch
              %177 = sbr.rel target = $region28
            $region27: #{_forward_impl.4} parent=23 // pred_region
              // Predicated region
              $region40: #{_forward_impl.4} parent=27 // pred_check
                _
              $region41: #{_forward_impl.4} parent=27 // pred_check_branch
                %255 = sbr.rel (0) target = $region43
              $region42: #{_forward_impl.4} parent=27 // pred_region
                loop: start=0, step=1, limit=1
                $region44: #{_forward_impl.4} parent=42 // loop_pre_header
                  _
                $region45: #{_forward_impl.4} parent=42 // loop_header
                  %s257 = sphi 0, %s261
                  %p258 = scmp.ge.s32.totalorder %s257, 1
                  %s262 = sphi %s173, %s173
                  %s263 = sphi %s166, %s166
                $region46: #{_forward_impl.4} parent=42 // loop_header_branch
                  %260 = sbr.rel (%p258) target = $region50
                $region47: #{_forward_impl.4} parent=42 // loop_body
                  _
                $region48: #{_forward_impl.4} parent=42 // loop_footer
                  %s261 = sadd.s32 1, %s257
                $region49: #{_forward_impl.4} parent=42 // loop_footer_branch
                  %256 = sbr.rel target = $region45
                $region50: #{_forward_impl.4} parent=42 // loop_exit
                  _
                %s265 = ssub.s32 16, 1
                loop: start=0, step=1, limit=1
                $region51: #{_forward_impl.4} parent=42 // loop_pre_header
                  _
                $region52: #{_forward_impl.4} parent=42 // loop_header
                  %s267 = sphi 0, %s271
                  %p268 = scmp.ge.s32.totalorder %s267, 1
                  %s272 = sphi %s173, %s173
                  %s273 = sphi %s166, %s166
                $region53: #{_forward_impl.4} parent=42 // loop_header_branch
                  %270 = sbr.rel (%p268) target = $region57
                $region54: #{_forward_impl.4} parent=42 // loop_body
                  %v274 = vld [vmem:[%s272] sm:%s265]
                  %275 = vst [vmem:[%s273] sm:%s265] %v274
                  %v276 = vld [vmem:[%s272 + $0x8] sm:%s265]
                  %277 = vst [vmem:[%s273 + $0x4] sm:%s265] %v276
                  %v278 = vld [vmem:[%s272 + $0x10] sm:%s265]
                  %279 = vst [vmem:[%s273 + $0x8] sm:%s265] %v278
                  %v280 = vld [vmem:[%s272 + $0x18] sm:%s265]
                  %281 = vst [vmem:[%s273 + $0xc] sm:%s265] %v280
                  %v282 = vld [vmem:[%s272 + $0x20] sm:%s265]
                  %283 = vst [vmem:[%s273 + $0x10] sm:%s265] %v282
                  %v284 = vld [vmem:[%s272 + $0x28] sm:%s265]
                  %285 = vst [vmem:[%s273 + $0x14] sm:%s265] %v284
                  %v286 = vld [vmem:[%s272 + $0x30] sm:%s265]
                  %287 = vst [vmem:[%s273 + $0x18] sm:%s265] %v286
                  %v288 = vld [vmem:[%s272 + $0x38] sm:%s265]
                  %289 = vst [vmem:[%s273 + $0x1c] sm:%s265] %v288
                  %v290 = vld [vmem:[%s272 + $0x40] sm:%s265]
                  %291 = vst [vmem:[%s273 + $0x20] sm:%s265] %v290
                  %v292 = vld [vmem:[%s272 + $0x48] sm:%s265]
                  %293 = vst [vmem:[%s273 + $0x24] sm:%s265] %v292
                  %v294 = vld [vmem:[%s272 + $0x50] sm:%s265]
                  %295 = vst [vmem:[%s273 + $0x28] sm:%s265] %v294
                  %v296 = vld [vmem:[%s272 + $0x58] sm:%s265]
                  %297 = vst [vmem:[%s273 + $0x2c] sm:%s265] %v296
                  %v298 = vld [vmem:[%s272 + $0x60] sm:%s265]
                  %299 = vst [vmem:[%s273 + $0x30] sm:%s265] %v298
                  %v300 = vld [vmem:[%s272 + $0x68] sm:%s265]
                  %301 = vst [vmem:[%s273 + $0x34] sm:%s265] %v300
                  %v302 = vld [vmem:[%s272 + $0x70] sm:%s265]
                  %303 = vst [vmem:[%s273 + $0x38] sm:%s265] %v302
                  %v304 = vld [vmem:[%s272 + $0x78] sm:%s265]
                  %305 = vst [vmem:[%s273 + $0x3c] sm:%s265] %v304
                  %v306 = vld [vmem:[%s272 + $0x80] sm:%s265]
                  %307 = vst [vmem:[%s273 + $0x40] sm:%s265] %v306
                  %v308 = vld [vmem:[%s272 + $0x88] sm:%s265]
                  %309 = vst [vmem:[%s273 + $0x44] sm:%s265] %v308
                  %v310 = vld [vmem:[%s272 + $0x90] sm:%s265]
                  %311 = vst [vmem:[%s273 + $0x48] sm:%s265] %v310
                  %v312 = vld [vmem:[%s272 + $0x98] sm:%s265]
                  %313 = vst [vmem:[%s273 + $0x4c] sm:%s265] %v312
                  %v314 = vld [vmem:[%s272 + $0xa0] sm:%s265]
                  %315 = vst [vmem:[%s273 + $0x50] sm:%s265] %v314
                  %v316 = vld [vmem:[%s272 + $0xa8] sm:%s265]
                  %317 = vst [vmem:[%s273 + $0x54] sm:%s265] %v316
                  %v318 = vld [vmem:[%s272 + $0xb0] sm:%s265]
                  %319 = vst [vmem:[%s273 + $0x58] sm:%s265] %v318
                  %v320 = vld [vmem:[%s272 + $0xb8] sm:%s265]
                  %321 = vst [vmem:[%s273 + $0x5c] sm:%s265] %v320
                  %v322 = vld [vmem:[%s272 + $0xc0] sm:%s265]
                  %323 = vst [vmem:[%s273 + $0x60] sm:%s265] %v322
                  %v324 = vld [vmem:[%s272 + $0xc8] sm:%s265]
                  %325 = vst [vmem:[%s273 + $0x64] sm:%s265] %v324
                  %v326 = vld [vmem:[%s272 + $0xd0] sm:%s265]
                  %327 = vst [vmem:[%s273 + $0x68] sm:%s265] %v326
                  %v328 = vld [vmem:[%s272 + $0xd8] sm:%s265]
                  %329 = vst [vmem:[%s273 + $0x6c] sm:%s265] %v328
                  %v330 = vld [vmem:[%s272 + $0xe0] sm:%s265]
                  %331 = vst [vmem:[%s273 + $0x70] sm:%s265] %v330
                  %v332 = vld [vmem:[%s272 + $0xe8] sm:%s265]
                  %333 = vst [vmem:[%s273 + $0x74] sm:%s265] %v332
                  %v334 = vld [vmem:[%s272 + $0xf0] sm:%s265]
                  %335 = vst [vmem:[%s273 + $0x78] sm:%s265] %v334
                  %v336 = vld [vmem:[%s272 + $0xf8] sm:%s265]
                  %337 = vst [vmem:[%s273 + $0x7c] sm:%s265] %v336
                $region55: #{_forward_impl.4} parent=42 // loop_footer
                  %s271 = sadd.s32 1, %s267
                $region56: #{_forward_impl.4} parent=42 // loop_footer_branch
                  %266 = sbr.rel target = $region52
                $region57: #{_forward_impl.4} parent=42 // loop_exit
                  _
              $region43: #{_forward_impl.4} parent=27 // pred_fallthru
                _
            $region28: #{_forward_impl.4} parent=23 // pred_fallthru
              _
            // Predicated region
            $region29: #{_forward_impl.4} parent=23 // pred_check
              _
            $region30: #{_forward_impl.4} parent=23 // pred_check_branch
              %179 = sbr.rel (0) target = $region32
            $region31: #{_forward_impl.4} parent=23 // pred_region
              %s181 = ssub.s32 16, 1
              loop: start=0, step=1, limit=1
              $region33: #{_forward_impl.4} parent=31 // loop_pre_header
                _
              $region34: #{_forward_impl.4} parent=31 // loop_header
                %s183 = sphi 0, %s187
                %p184 = scmp.ge.s32.totalorder %s183, 1
                %s188 = sphi %s173, %s173
                %s189 = sphi %s166, %s166
              $region35: #{_forward_impl.4} parent=31 // loop_header_branch
                %186 = sbr.rel (%p184) target = $region39
              $region36: #{_forward_impl.4} parent=31 // loop_body
                %v190 = vld [vmem:[%s188] sm:%s181]
                %191 = vst [vmem:[%s189] sm:%s181] %v190
                %v192 = vld [vmem:[%s188 + $0x8] sm:%s181]
                %193 = vst [vmem:[%s189 + $0x4] sm:%s181] %v192
                %v194 = vld [vmem:[%s188 + $0x10] sm:%s181]
                %195 = vst [vmem:[%s189 + $0x8] sm:%s181] %v194
                %v196 = vld [vmem:[%s188 + $0x18] sm:%s181]
                %197 = vst [vmem:[%s189 + $0xc] sm:%s181] %v196
                %v198 = vld [vmem:[%s188 + $0x20] sm:%s181]
                %199 = vst [vmem:[%s189 + $0x10] sm:%s181] %v198
                %v200 = vld [vmem:[%s188 + $0x28] sm:%s181]
                %201 = vst [vmem:[%s189 + $0x14] sm:%s181] %v200
                %v202 = vld [vmem:[%s188 + $0x30] sm:%s181]
                %203 = vst [vmem:[%s189 + $0x18] sm:%s181] %v202
                %v204 = vld [vmem:[%s188 + $0x38] sm:%s181]
                %205 = vst [vmem:[%s189 + $0x1c] sm:%s181] %v204
                %v206 = vld [vmem:[%s188 + $0x40] sm:%s181]
                %207 = vst [vmem:[%s189 + $0x20] sm:%s181] %v206
                %v208 = vld [vmem:[%s188 + $0x48] sm:%s181]
                %209 = vst [vmem:[%s189 + $0x24] sm:%s181] %v208
                %v210 = vld [vmem:[%s188 + $0x50] sm:%s181]
                %211 = vst [vmem:[%s189 + $0x28] sm:%s181] %v210
                %v212 = vld [vmem:[%s188 + $0x58] sm:%s181]
                %213 = vst [vmem:[%s189 + $0x2c] sm:%s181] %v212
                %v214 = vld [vmem:[%s188 + $0x60] sm:%s181]
                %215 = vst [vmem:[%s189 + $0x30] sm:%s181] %v214
                %v216 = vld [vmem:[%s188 + $0x68] sm:%s181]
                %217 = vst [vmem:[%s189 + $0x34] sm:%s181] %v216
                %v218 = vld [vmem:[%s188 + $0x70] sm:%s181]
                %219 = vst [vmem:[%s189 + $0x38] sm:%s181] %v218
                %v220 = vld [vmem:[%s188 + $0x78] sm:%s181]
                %221 = vst [vmem:[%s189 + $0x3c] sm:%s181] %v220
                %v222 = vld [vmem:[%s188 + $0x80] sm:%s181]
                %223 = vst [vmem:[%s189 + $0x40] sm:%s181] %v222
                %v224 = vld [vmem:[%s188 + $0x88] sm:%s181]
                %225 = vst [vmem:[%s189 + $0x44] sm:%s181] %v224
                %v226 = vld [vmem:[%s188 + $0x90] sm:%s181]
                %227 = vst [vmem:[%s189 + $0x48] sm:%s181] %v226
                %v228 = vld [vmem:[%s188 + $0x98] sm:%s181]
                %229 = vst [vmem:[%s189 + $0x4c] sm:%s181] %v228
                %v230 = vld [vmem:[%s188 + $0xa0] sm:%s181]
                %231 = vst [vmem:[%s189 + $0x50] sm:%s181] %v230
                %v232 = vld [vmem:[%s188 + $0xa8] sm:%s181]
                %233 = vst [vmem:[%s189 + $0x54] sm:%s181] %v232
                %v234 = vld [vmem:[%s188 + $0xb0] sm:%s181]
                %235 = vst [vmem:[%s189 + $0x58] sm:%s181] %v234
                %v236 = vld [vmem:[%s188 + $0xb8] sm:%s181]
                %237 = vst [vmem:[%s189 + $0x5c] sm:%s181] %v236
                %v238 = vld [vmem:[%s188 + $0xc0] sm:%s181]
                %239 = vst [vmem:[%s189 + $0x60] sm:%s181] %v238
                %v240 = vld [vmem:[%s188 + $0xc8] sm:%s181]
                %241 = vst [vmem:[%s189 + $0x64] sm:%s181] %v240
                %v242 = vld [vmem:[%s188 + $0xd0] sm:%s181]
                %243 = vst [vmem:[%s189 + $0x68] sm:%s181] %v242
                %v244 = vld [vmem:[%s188 + $0xd8] sm:%s181]
                %245 = vst [vmem:[%s189 + $0x6c] sm:%s181] %v244
                %v246 = vld [vmem:[%s188 + $0xe0] sm:%s181]
                %247 = vst [vmem:[%s189 + $0x70] sm:%s181] %v246
                %v248 = vld [vmem:[%s188 + $0xe8] sm:%s181]
                %249 = vst [vmem:[%s189 + $0x74] sm:%s181] %v248
                %v250 = vld [vmem:[%s188 + $0xf0] sm:%s181]
                %251 = vst [vmem:[%s189 + $0x78] sm:%s181] %v250
                %v252 = vld [vmem:[%s188 + $0xf8] sm:%s181]
                %253 = vst [vmem:[%s189 + $0x7c] sm:%s181] %v252
              $region37: #{_forward_impl.4} parent=31 // loop_footer
                %s187 = sadd.s32 1, %s183
              $region38: #{_forward_impl.4} parent=31 // loop_footer_branch
                %182 = sbr.rel target = $region34
              $region39: #{_forward_impl.4} parent=31 // loop_exit
                _
            $region32: #{_forward_impl.4} parent=23 // pred_fallthru
              _
          $region24: #{_forward_impl.4} parent=19 // pred_fallthru
            _
          %338 = vnop
        $region20: #{_forward_impl.4} parent=15 // pred_fallthru
          _
        // Predicated region
        $region58: #{_forward_impl.4} parent=15 // pred_check
          %p339 = pneg %p79
        $region59: #{_forward_impl.4} parent=15 // pred_check_branch
          %341 = sbr.rel (%p339) target = $region61
        $region60: #{_forward_impl.4} parent=15 // pred_region
          %s342 = smul.u32 16, %s19
          %p343 = scmp.lt.s32.totalorder %s342, 31
          %s344 = scalar_select %p343, %s342, 31
          %s345 = smul.addr %s344, 4
          %s346 = scalar_lea.vmem %s1, %s345
          %s347 = smul.u32 16, %s19
        $region61: #{_forward_impl.4} parent=15 // pred_fallthru
          _
      $region16: #{_forward_impl.4} parent=5 // pred_fallthru
        _
      %p348 = scmp.le.s32.totalorder 1, %s10
      %p349 = scmp.lt.s32.totalorder %s10, 9
      %p350 = pnand %p348, %p349
      %p351 = pneg %p350
      // Predicated region
      $region62: #{_forward_impl.4} parent=5 // pred_check
        _
      $region63: #{_forward_impl.4} parent=5 // pred_check_branch
        %353 = sbr.rel (%p350) target = $region65
      $region64: #{_forward_impl.4} parent=5 // pred_region
        %s354 = ssub.s32 %s10, 1
        %s355 = sand.u32 %s46, 1
        %s356 = sand.u32 %s46, 1
        %s357 = smul.addr %s356, 128
        %s358 = scalar_lea.vmem [#allocation3], %s357
        // Predicated region
        $region66: #{_forward_impl.4} parent=64 // pred_check
          %p359 = pneg %p59
        $region67: #{_forward_impl.4} parent=64 // pred_check_branch
          %361 = sbr.rel (%p359) target = $region69
        $region68: #{_forward_impl.4} parent=64 // pred_region
          _
        $region69: #{_forward_impl.4} parent=64 // pred_fallthru
          _
        %s362 = sand.u32 %s46, 1
        %s363 = sand.u32 %s46, 1
        %s364 = smul.addr %s363, 128
        %s365 = scalar_lea.vmem [#allocation3], %s364
        %p366 = pneg %p59
        %p367 = pneg %p56
        %s368 = smul.u32 16, %s22
        %p369 = scmp.lt.s32.totalorder %s368, 31
        %s370 = scalar_select %p369, %s368, 31
        %s371 = smul.addr %s370, 4
        %s372 = scalar_lea.vmem %s1, %s371
        %p373 = pneg %p85
        %p374 = pneg %p82
        %p375 = pneg %p113
        %p376 = pneg %p110
        %s377 = smul.u32 32, %s21
        %p378 = scmp.lt.s32.totalorder %s20, 1
        %s379 = scalar_select %p378, %s20, 1
        %p380 = scmp.lt.s32.totalorder %s377, 63
        %s381 = scalar_select %p380, %s377, 63
        %s382 = smul.addr %s379, 64
        %s383 = sadd.s32 %s381, %s382
        %s384 = smul.addr %s383, 8
        %s385 = scalar_lea.vmem %s2, %s384
        %p386 = pneg %p141
        %p387 = pneg %p138
        %p388 = scmp.lt.s32.totalorder %s20, 1
        %s389 = scalar_select %p388, %s20, 1
        %p390 = scmp.lt.s32.totalorder %s21, 1
        %s391 = scalar_select %p390, %s21, 1
        %s392 = smul.addr %s389, 2
        %s393 = sadd.s32 %s391, %s392
        %s394 = smul.addr %s393, 8
        %s395 = scalar_lea.vmem %s3, %s394
        %s396 = smul.u32 32, %s21
        %s397 = smul.u32 16, %s22
        %p398 = scmp.lt.s32.totalorder %s397, 31
        %s399 = scalar_select %p398, %s397, 31
        %s400 = smul.addr %s399, 4
        %s401 = scalar_lea.vmem %s1, %s400
        %s402 = smul.u32 16, %s22
        %s403 = smul.u32 32, %s21
        %p404 = scmp.lt.s32.totalorder %s20, 1
        %s405 = scalar_select %p404, %s20, 1
        %p406 = scmp.lt.s32.totalorder %s403, 63
        %s407 = scalar_select %p406, %s403, 63
        %s408 = smul.addr %s405, 64
        %s409 = sadd.s32 %s407, %s408
        %s410 = smul.addr %s409, 8
        %s411 = scalar_lea.vmem %s2, %s410
        %s412 = smul.u32 32, %s21
        %p413 = scmp.lt.s32.totalorder %s20, 1
        %s414 = scalar_select %p413, %s20, 1
        %p415 = scmp.lt.s32.totalorder %s21, 1
        %s416 = scalar_select %p415, %s21, 1
        %s417 = smul.addr %s414, 2
        %s418 = sadd.s32 %s416, %s417
        %s419 = smul.addr %s418, 8
        %s420 = scalar_lea.vmem %s3, %s419
        %p422 = scmp.eq.s32.totalorder %s22, 0
        // Predicated region
        $region70: #{_forward_impl.4} parent=64 // pred_check
          %p423 = pneg %p422
        $region71: #{_forward_impl.4} parent=64 // pred_check_branch
          %425 = sbr.rel (%p423) target = $region73
        $region72: #{_forward_impl.4} parent=64 // pred_region
          %426 = vst [vmem:[#allocation2] sm:$0xff] 0.0
          %427 = vst [vmem:[#allocation2 + $0x8] sm:$0xff] 0.0
          %428 = vst [vmem:[#allocation2 + $0x10] sm:$0xff] 0.0
          %429 = vst [vmem:[#allocation2 + $0x18] sm:$0xff] 0.0
          %430 = vst [vmem:[#allocation2 + $0x20] sm:$0xff] 0.0
          %431 = vst [vmem:[#allocation2 + $0x28] sm:$0xff] 0.0
          %432 = vst [vmem:[#allocation2 + $0x30] sm:$0xff] 0.0
          %433 = vst [vmem:[#allocation2 + $0x38] sm:$0xff] 0.0
          %434 = vst [vmem:[#allocation2 + $0x40] sm:$0xff] 0.0
          %435 = vst [vmem:[#allocation2 + $0x48] sm:$0xff] 0.0
          %436 = vst [vmem:[#allocation2 + $0x50] sm:$0xff] 0.0
          %437 = vst [vmem:[#allocation2 + $0x58] sm:$0xff] 0.0
          %438 = vst [vmem:[#allocation2 + $0x60] sm:$0xff] 0.0
          %439 = vst [vmem:[#allocation2 + $0x68] sm:$0xff] 0.0
          %440 = vst [vmem:[#allocation2 + $0x70] sm:$0xff] 0.0
          %441 = vst [vmem:[#allocation2 + $0x78] sm:$0xff] 0.0
          %442 = vst [vmem:[#allocation2 + $0x80] sm:$0xff] 0.0
          %443 = vst [vmem:[#allocation2 + $0x88] sm:$0xff] 0.0
          %444 = vst [vmem:[#allocation2 + $0x90] sm:$0xff] 0.0
          %445 = vst [vmem:[#allocation2 + $0x98] sm:$0xff] 0.0
          %446 = vst [vmem:[#allocation2 + $0xa0] sm:$0xff] 0.0
          %447 = vst [vmem:[#allocation2 + $0xa8] sm:$0xff] 0.0
          %448 = vst [vmem:[#allocation2 + $0xb0] sm:$0xff] 0.0
          %449 = vst [vmem:[#allocation2 + $0xb8] sm:$0xff] 0.0
          %450 = vst [vmem:[#allocation2 + $0xc0] sm:$0xff] 0.0
          %451 = vst [vmem:[#allocation2 + $0xc8] sm:$0xff] 0.0
          %452 = vst [vmem:[#allocation2 + $0xd0] sm:$0xff] 0.0
          %453 = vst [vmem:[#allocation2 + $0xd8] sm:$0xff] 0.0
          %454 = vst [vmem:[#allocation2 + $0xe0] sm:$0xff] 0.0
          %455 = vst [vmem:[#allocation2 + $0xe8] sm:$0xff] 0.0
          %456 = vst [vmem:[#allocation2 + $0xf0] sm:$0xff] 0.0
          %457 = vst [vmem:[#allocation2 + $0xf8] sm:$0xff] 0.0
        $region73: #{_forward_impl.4} parent=64 // pred_fallthru
          _
        %v458 = vld [vmem:[#allocation2] sm:$0xff]
        %v459 = vld [vmem:[#allocation2 + $0x8] sm:$0xff]
        %v460 = vld [vmem:[#allocation2 + $0x10] sm:$0xff]
        %v461 = vld [vmem:[#allocation2 + $0x18] sm:$0xff]
        %v462 = vld [vmem:[#allocation2 + $0x20] sm:$0xff]
        %v463 = vld [vmem:[#allocation2 + $0x28] sm:$0xff]
        %v464 = vld [vmem:[#allocation2 + $0x30] sm:$0xff]
        %v465 = vld [vmem:[#allocation2 + $0x38] sm:$0xff]
        %v466 = vld [vmem:[#allocation2 + $0x40] sm:$0xff]
        %v467 = vld [vmem:[#allocation2 + $0x48] sm:$0xff]
        %v468 = vld [vmem:[#allocation2 + $0x50] sm:$0xff]
        %v469 = vld [vmem:[#allocation2 + $0x58] sm:$0xff]
        %v470 = vld [vmem:[#allocation2 + $0x60] sm:$0xff]
        %v471 = vld [vmem:[#allocation2 + $0x68] sm:$0xff]
        %v472 = vld [vmem:[#allocation2 + $0x70] sm:$0xff]
        %v473 = vld [vmem:[#allocation2 + $0x78] sm:$0xff]
        %v474 = vld [vmem:[#allocation2 + $0x80] sm:$0xff]
        %v475 = vld [vmem:[#allocation2 + $0x88] sm:$0xff]
        %v476 = vld [vmem:[#allocation2 + $0x90] sm:$0xff]
        %v477 = vld [vmem:[#allocation2 + $0x98] sm:$0xff]
        %v478 = vld [vmem:[#allocation2 + $0xa0] sm:$0xff]
        %v479 = vld [vmem:[#allocation2 + $0xa8] sm:$0xff]
        %v480 = vld [vmem:[#allocation2 + $0xb0] sm:$0xff]
        %v481 = vld [vmem:[#allocation2 + $0xb8] sm:$0xff]
        %v482 = vld [vmem:[#allocation2 + $0xc0] sm:$0xff]
        %v483 = vld [vmem:[#allocation2 + $0xc8] sm:$0xff]
        %v484 = vld [vmem:[#allocation2 + $0xd0] sm:$0xff]
        %v485 = vld [vmem:[#allocation2 + $0xd8] sm:$0xff]
        %v486 = vld [vmem:[#allocation2 + $0xe0] sm:$0xff]
        %v487 = vld [vmem:[#allocation2 + $0xe8] sm:$0xff]
        %v488 = vld [vmem:[#allocation2 + $0xf0] sm:$0xff]
        %v489 = vld [vmem:[#allocation2 + $0xf8] sm:$0xff]
        %v490 = vld [vmem:[%s358] sm:$0xf]
        %v491 = vld [vmem:[%s358 + $0x4] sm:$0xf]
        %v492 = vld [vmem:[%s358 + $0x8] sm:$0xf]
        %v493 = vld [vmem:[%s358 + $0xc] sm:$0xf]
        %v494 = vld [vmem:[%s358 + $0x10] sm:$0xf]
        %v495 = vld [vmem:[%s358 + $0x14] sm:$0xf]
        %v496 = vld [vmem:[%s358 + $0x18] sm:$0xf]
        %v497 = vld [vmem:[%s358 + $0x1c] sm:$0xf]
        %v498 = vld [vmem:[%s358 + $0x20] sm:$0xf]
        %v499 = vld [vmem:[%s358 + $0x24] sm:$0xf]
        %v500 = vld [vmem:[%s358 + $0x28] sm:$0xf]
        %v501 = vld [vmem:[%s358 + $0x2c] sm:$0xf]
        %v502 = vld [vmem:[%s358 + $0x30] sm:$0xf]
        %v503 = vld [vmem:[%s358 + $0x34] sm:$0xf]
        %v504 = vld [vmem:[%s358 + $0x38] sm:$0xf]
        %v505 = vld [vmem:[%s358 + $0x3c] sm:$0xf]
        %v506 = vld [vmem:[%s358 + $0x40] sm:$0xf]
        %v507 = vld [vmem:[%s358 + $0x44] sm:$0xf]
        %v508 = vld [vmem:[%s358 + $0x48] sm:$0xf]
        %v509 = vld [vmem:[%s358 + $0x4c] sm:$0xf]
        %v510 = vld [vmem:[%s358 + $0x50] sm:$0xf]
        %v511 = vld [vmem:[%s358 + $0x54] sm:$0xf]
        %v512 = vld [vmem:[%s358 + $0x58] sm:$0xf]
        %v513 = vld [vmem:[%s358 + $0x5c] sm:$0xf]
        %v514 = vld [vmem:[%s358 + $0x60] sm:$0xf]
        %v515 = vld [vmem:[%s358 + $0x64] sm:$0xf]
        %v516 = vld [vmem:[%s358 + $0x68] sm:$0xf]
        %v517 = vld [vmem:[%s358 + $0x6c] sm:$0xf]
        %v518 = vld [vmem:[%s358 + $0x70] sm:$0xf]
        %v519 = vld [vmem:[%s358 + $0x74] sm:$0xf]
        %v520 = vld [vmem:[%s358 + $0x78] sm:$0xf]
        %v521 = vld [vmem:[%s358 + $0x7c] sm:$0xf]
        %v522 = vld [vmem:[%s401] sm:$0xf]
        %v523 = vld [vmem:[%s401 + $0x4] sm:$0xf]
        %v524 = vld [vmem:[%s401 + $0x8] sm:$0xf]
        %v525 = vld [vmem:[%s401 + $0xc] sm:$0xf]
        %v526 = vld [vmem:[%s401 + $0x10] sm:$0xf]
        %v527 = vld [vmem:[%s401 + $0x14] sm:$0xf]
        %v528 = vld [vmem:[%s401 + $0x18] sm:$0xf]
        %v529 = vld [vmem:[%s401 + $0x1c] sm:$0xf]
        %v530 = vld [vmem:[%s401 + $0x20] sm:$0xf]
        %v531 = vld [vmem:[%s401 + $0x24] sm:$0xf]
        %v532 = vld [vmem:[%s401 + $0x28] sm:$0xf]
        %v533 = vld [vmem:[%s401 + $0x2c] sm:$0xf]
        %v534 = vld [vmem:[%s401 + $0x30] sm:$0xf]
        %v535 = vld [vmem:[%s401 + $0x34] sm:$0xf]
        %v536 = vld [vmem:[%s401 + $0x38] sm:$0xf]
        %v537 = vld [vmem:[%s401 + $0x3c] sm:$0xf]
        %v570 = vunpack.c.l.b16 %v490
        %v571 = vunpack.c.l.b16 %v491
        %v572 = vunpack.c.l.b16 %v492
        %v573 = vunpack.c.l.b16 %v493
        %v574 = vunpack.c.l.b16 %v494
        %v575 = vunpack.c.l.b16 %v495
        %v576 = vunpack.c.l.b16 %v496
        %v577 = vunpack.c.l.b16 %v497
        %v578 = vunpack.c.l.b16 %v498
        %v579 = vunpack.c.l.b16 %v499
        %v580 = vunpack.c.l.b16 %v500
        %v581 = vunpack.c.l.b16 %v501
        %v582 = vunpack.c.l.b16 %v502
        %v583 = vunpack.c.l.b16 %v503
        %v584 = vunpack.c.l.b16 %v504
        %v585 = vunpack.c.l.b16 %v505
        %v586 = vunpack.c.l.b16 %v506
        %v587 = vunpack.c.l.b16 %v507
        %v588 = vunpack.c.l.b16 %v508
        %v589 = vunpack.c.l.b16 %v509
        %v590 = vunpack.c.l.b16 %v510
        %v591 = vunpack.c.l.b16 %v511
        %v592 = vunpack.c.l.b16 %v512
        %v593 = vunpack.c.l.b16 %v513
        %v594 = vunpack.c.l.b16 %v514
        %v595 = vunpack.c.l.b16 %v515
        %v596 = vunpack.c.l.b16 %v516
        %v597 = vunpack.c.l.b16 %v517
        %v598 = vunpack.c.l.b16 %v518
        %v599 = vunpack.c.l.b16 %v519
        %v600 = vunpack.c.l.b16 %v520
        %v601 = vunpack.c.l.b16 %v521
        %v602 = vpack.c.b16 %v571, %v570
        %v603 = vpack.c.b16 %v573, %v572
        %v604 = vpack.c.b16 %v575, %v574
        %v605 = vpack.c.b16 %v577, %v576
        %v606 = vpack.c.b16 %v579, %v578
        %v607 = vpack.c.b16 %v581, %v580
        %v608 = vpack.c.b16 %v583, %v582
        %v609 = vpack.c.b16 %v585, %v584
        %v610 = vpack.c.b16 %v587, %v586
        %v611 = vpack.c.b16 %v589, %v588
        %v612 = vpack.c.b16 %v591, %v590
        %v613 = vpack.c.b16 %v593, %v592
        %v614 = vpack.c.b16 %v595, %v594
        %v615 = vpack.c.b16 %v597, %v596
        %v616 = vpack.c.b16 %v599, %v598
        %v617 = vpack.c.b16 %v601, %v600
        %v650 = vunpack.c.l.b16 %v522
        %v651 = vunpack.c.l.b16 %v523
        %v652 = vunpack.c.l.b16 %v524
        %v653 = vunpack.c.l.b16 %v525
        %v654 = vunpack.c.l.b16 %v526
        %v655 = vunpack.c.l.b16 %v527
        %v656 = vunpack.c.l.b16 %v528
        %v657 = vunpack.c.l.b16 %v529
        %v658 = vunpack.c.l.b16 %v530
        %v659 = vunpack.c.l.b16 %v531
        %v660 = vunpack.c.l.b16 %v532
        %v661 = vunpack.c.l.b16 %v533
        %v662 = vunpack.c.l.b16 %v534
        %v663 = vunpack.c.l.b16 %v535
        %v664 = vunpack.c.l.b16 %v536
        %v665 = vunpack.c.l.b16 %v537
        %v666 = vpack.c.b16 %v651, %v650
        %v667 = vpack.c.b16 %v653, %v652
        %v668 = vpack.c.b16 %v655, %v654
        %v669 = vpack.c.b16 %v657, %v656
        %v670 = vpack.c.b16 %v659, %v658
        %v671 = vpack.c.b16 %v661, %v660
        %v672 = vpack.c.b16 %v663, %v662
        %v673 = vpack.c.b16 %v665, %v664
        %682 = vmatprep.subr.bf16.mxu0 0
        %683 = vmatpush1.bf16.msra.mxu0 %v673
        %684 = vmatprep.subr.bf16.mxu0 0
        %685 = vmatpush1.bf16.msra.mxu0 %v672
        %686 = vmatprep.subr.bf16.mxu0 0
        %687 = vmatpush1.bf16.msra.mxu0 %v671
        %688 = vmatprep.subr.bf16.mxu0 0
        %689 = vmatpush1.bf16.msra.mxu0 %v670
        %690 = vmatprep.subr.bf16.mxu0 0
        %691 = vmatpush1.bf16.msra.mxu0 %v669
        %692 = vmatprep.subr.bf16.mxu0 0
        %693 = vmatpush1.bf16.msra.mxu0 %v668
        %694 = vmatprep.subr.bf16.mxu0 0
        %695 = vmatpush1.bf16.msra.mxu0 %v667
        %696 = vmatprep.subr.bf16.mxu0 0
        %697 = vmatpush1.bf16.msra.mxu0 %v666
        %698 = vmatprep.subr.bf16.mxu0 0
        %699 = vmatpush2.bf16.msra.mxu0 0
        %700 = vmatprep.subr.bf16.mxu0 0
        %701 = vmatpush2.bf16.msra.mxu0 0
        %702 = vmatprep.subr.bf16.mxu0 0
        %703 = vmatpush2.bf16.msra.mxu0 0
        %704 = vmatprep.subr.bf16.mxu0 0
        %705 = vmatpush2.bf16.msra.mxu0 0
        %706 = vmatprep.subr.bf16.mxu0 0
        %707 = vmatpush2.bf16.msra.mxu0 0
        %708 = vmatprep.subr.bf16.mxu0 0
        %709 = vmatpush2.bf16.msra.mxu0 0
        %710 = vmatprep.subr.bf16.mxu0 0
        %711 = vmatpush2.bf16.msra.mxu0 0
        %712 = vmatprep.subr.bf16.mxu0 0
        %713 = vmatpush2.bf16.msra.mxu0 0
        %714 = vmatprep.mubr.bf16.mxu0 0
        %715 = vmatmul.mubr.bf16.gmra.mxu0 %v602
        %v716 = vpop.f32.mrf.mxu0
        %v717 = vadd.f32 0.0, %v716
        %v718 = vpop.f32.mrf.mxu0
        %v719 = vpop.f32.mrf.mxu0
        %v720 = vadd.f32 0.0, %v719
        %v721 = vpop.f32.mrf.mxu0
        %722 = vmatprep.mubr.bf16.mxu0 0
        %723 = vmatmul.mubr.bf16.gmra.mxu0 %v603
        %v724 = vpop.f32.mrf.mxu0
        %v725 = vadd.f32 0.0, %v724
        %v726 = vpop.f32.mrf.mxu0
        %v727 = vpop.f32.mrf.mxu0
        %v728 = vadd.f32 0.0, %v727
        %v729 = vpop.f32.mrf.mxu0
        %730 = vmatprep.mubr.bf16.mxu0 0
        %731 = vmatmul.mubr.bf16.gmra.mxu0 %v604
        %v732 = vpop.f32.mrf.mxu0
        %v733 = vadd.f32 0.0, %v732
        %v734 = vpop.f32.mrf.mxu0
        %v735 = vpop.f32.mrf.mxu0
        %v736 = vadd.f32 0.0, %v735
        %v737 = vpop.f32.mrf.mxu0
        %738 = vmatprep.mubr.bf16.mxu0 0
        %739 = vmatmul.mubr.bf16.gmra.mxu0 %v605
        %v740 = vpop.f32.mrf.mxu0
        %v741 = vadd.f32 0.0, %v740
        %v742 = vpop.f32.mrf.mxu0
        %v743 = vpop.f32.mrf.mxu0
        %v744 = vadd.f32 0.0, %v743
        %v745 = vpop.f32.mrf.mxu0
        %746 = vmatprep.mubr.bf16.mxu0 0
        %747 = vmatmul.mubr.bf16.gmra.mxu0 %v606
        %v748 = vpop.f32.mrf.mxu0
        %v749 = vadd.f32 0.0, %v748
        %v750 = vpop.f32.mrf.mxu0
        %v751 = vpop.f32.mrf.mxu0
        %v752 = vadd.f32 0.0, %v751
        %v753 = vpop.f32.mrf.mxu0
        %754 = vmatprep.mubr.bf16.mxu0 0
        %755 = vmatmul.mubr.bf16.gmra.mxu0 %v607
        %v756 = vpop.f32.mrf.mxu0
        %v757 = vadd.f32 0.0, %v756
        %v758 = vpop.f32.mrf.mxu0
        %v759 = vpop.f32.mrf.mxu0
        %v760 = vadd.f32 0.0, %v759
        %v761 = vpop.f32.mrf.mxu0
        %762 = vmatprep.mubr.bf16.mxu0 0
        %763 = vmatmul.mubr.bf16.gmra.mxu0 %v608
        %v764 = vpop.f32.mrf.mxu0
        %v765 = vadd.f32 0.0, %v764
        %v766 = vpop.f32.mrf.mxu0
        %v767 = vpop.f32.mrf.mxu0
        %v768 = vadd.f32 0.0, %v767
        %v769 = vpop.f32.mrf.mxu0
        %770 = vmatprep.mubr.bf16.mxu0 0
        %771 = vmatmul.mubr.bf16.gmra.mxu0 %v609
        %v772 = vpop.f32.mrf.mxu0
        %v773 = vadd.f32 0.0, %v772
        %v774 = vpop.f32.mrf.mxu0
        %v775 = vpop.f32.mrf.mxu0
        %v776 = vadd.f32 0.0, %v775
        %v777 = vpop.f32.mrf.mxu0
        %778 = vmatprep.mubr.bf16.mxu0 0
        %779 = vmatmul.mubr.bf16.gmra.mxu0 %v610
        %v780 = vpop.f32.mrf.mxu0
        %v781 = vadd.f32 0.0, %v780
        %v782 = vpop.f32.mrf.mxu0
        %v783 = vpop.f32.mrf.mxu0
        %v784 = vadd.f32 0.0, %v783
        %v785 = vpop.f32.mrf.mxu0
        %786 = vmatprep.mubr.bf16.mxu0 0
        %787 = vmatmul.mubr.bf16.gmra.mxu0 %v611
        %v788 = vpop.f32.mrf.mxu0
        %v789 = vadd.f32 0.0, %v788
        %v790 = vpop.f32.mrf.mxu0
        %v791 = vpop.f32.mrf.mxu0
        %v792 = vadd.f32 0.0, %v791
        %v793 = vpop.f32.mrf.mxu0
        %794 = vmatprep.mubr.bf16.mxu0 0
        %795 = vmatmul.mubr.bf16.gmra.mxu0 %v612
        %v796 = vpop.f32.mrf.mxu0
        %v797 = vadd.f32 0.0, %v796
        %v798 = vpop.f32.mrf.mxu0
        %v799 = vpop.f32.mrf.mxu0
        %v800 = vadd.f32 0.0, %v799
        %v801 = vpop.f32.mrf.mxu0
        %802 = vmatprep.mubr.bf16.mxu0 0
        %803 = vmatmul.mubr.bf16.gmra.mxu0 %v613
        %v804 = vpop.f32.mrf.mxu0
        %v805 = vadd.f32 0.0, %v804
        %v806 = vpop.f32.mrf.mxu0
        %v807 = vpop.f32.mrf.mxu0
        %v808 = vadd.f32 0.0, %v807
        %v809 = vpop.f32.mrf.mxu0
        %810 = vmatprep.mubr.bf16.mxu0 0
        %811 = vmatmul.mubr.bf16.gmra.mxu0 %v614
        %v812 = vpop.f32.mrf.mxu0
        %v813 = vadd.f32 0.0, %v812
        %v814 = vpop.f32.mrf.mxu0
        %v815 = vpop.f32.mrf.mxu0
        %v816 = vadd.f32 0.0, %v815
        %v817 = vpop.f32.mrf.mxu0
        %818 = vmatprep.mubr.bf16.mxu0 0
        %819 = vmatmul.mubr.bf16.gmra.mxu0 %v615
        %v820 = vpop.f32.mrf.mxu0
        %v821 = vadd.f32 0.0, %v820
        %v822 = vpop.f32.mrf.mxu0
        %v823 = vpop.f32.mrf.mxu0
        %v824 = vadd.f32 0.0, %v823
        %v825 = vpop.f32.mrf.mxu0
        %826 = vmatprep.mubr.bf16.mxu0 0
        %827 = vmatmul.mubr.bf16.gmra.mxu0 %v616
        %v828 = vpop.f32.mrf.mxu0
        %v829 = vadd.f32 0.0, %v828
        %v830 = vpop.f32.mrf.mxu0
        %v831 = vpop.f32.mrf.mxu0
        %v832 = vadd.f32 0.0, %v831
        %v833 = vpop.f32.mrf.mxu0
        %834 = vmatprep.mubr.bf16.mxu0 0
        %835 = vmatmul.mubr.bf16.gmra.mxu0 %v617
        %v836 = vpop.f32.mrf.mxu0
        %v837 = vadd.f32 0.0, %v836
        %v838 = vpop.f32.mrf.mxu0
        %v839 = vpop.f32.mrf.mxu0
        %v840 = vadd.f32 0.0, %v839
        %v841 = vpop.f32.mrf.mxu0
        %842 = vdwg.mxu0
        %v843 = vadd.f32 %v458, %v717
        %v844 = vadd.f32 %v459, %v720
        %v845 = vadd.f32 %v460, %v725
        %v846 = vadd.f32 %v461, %v728
        %v847 = vadd.f32 %v462, %v733
        %v848 = vadd.f32 %v463, %v736
        %v849 = vadd.f32 %v464, %v741
        %v850 = vadd.f32 %v465, %v744
        %v851 = vadd.f32 %v466, %v749
        %v852 = vadd.f32 %v467, %v752
        %v853 = vadd.f32 %v468, %v757
        %v854 = vadd.f32 %v469, %v760
        %v855 = vadd.f32 %v470, %v765
        %v856 = vadd.f32 %v471, %v768
        %v857 = vadd.f32 %v472, %v773
        %v858 = vadd.f32 %v473, %v776
        %v859 = vadd.f32 %v474, %v781
        %v860 = vadd.f32 %v475, %v784
        %v861 = vadd.f32 %v476, %v789
        %v862 = vadd.f32 %v477, %v792
        %v863 = vadd.f32 %v478, %v797
        %v864 = vadd.f32 %v479, %v800
        %v865 = vadd.f32 %v480, %v805
        %v866 = vadd.f32 %v481, %v808
        %v867 = vadd.f32 %v482, %v813
        %v868 = vadd.f32 %v483, %v816
        %v869 = vadd.f32 %v484, %v821
        %v870 = vadd.f32 %v485, %v824
        %v871 = vadd.f32 %v486, %v829
        %v872 = vadd.f32 %v487, %v832
        %v873 = vadd.f32 %v488, %v837
        %v874 = vadd.f32 %v489, %v840
        %875 = vst [vmem:[#allocation2] sm:$0xff] %v843
        %876 = vst [vmem:[#allocation2 + $0x8] sm:$0xff] %v844
        %877 = vst [vmem:[#allocation2 + $0x10] sm:$0xff] %v845
        %878 = vst [vmem:[#allocation2 + $0x18] sm:$0xff] %v846
        %879 = vst [vmem:[#allocation2 + $0x20] sm:$0xff] %v847
        %880 = vst [vmem:[#allocation2 + $0x28] sm:$0xff] %v848
        %881 = vst [vmem:[#allocation2 + $0x30] sm:$0xff] %v849
        %882 = vst [vmem:[#allocation2 + $0x38] sm:$0xff] %v850
        %883 = vst [vmem:[#allocation2 + $0x40] sm:$0xff] %v851
        %884 = vst [vmem:[#allocation2 + $0x48] sm:$0xff] %v852
        %885 = vst [vmem:[#allocation2 + $0x50] sm:$0xff] %v853
        %886 = vst [vmem:[#allocation2 + $0x58] sm:$0xff] %v854
        %887 = vst [vmem:[#allocation2 + $0x60] sm:$0xff] %v855
        %888 = vst [vmem:[#allocation2 + $0x68] sm:$0xff] %v856
        %889 = vst [vmem:[#allocation2 + $0x70] sm:$0xff] %v857
        %890 = vst [vmem:[#allocation2 + $0x78] sm:$0xff] %v858
        %891 = vst [vmem:[#allocation2 + $0x80] sm:$0xff] %v859
        %892 = vst [vmem:[#allocation2 + $0x88] sm:$0xff] %v860
        %893 = vst [vmem:[#allocation2 + $0x90] sm:$0xff] %v861
        %894 = vst [vmem:[#allocation2 + $0x98] sm:$0xff] %v862
        %895 = vst [vmem:[#allocation2 + $0xa0] sm:$0xff] %v863
        %896 = vst [vmem:[#allocation2 + $0xa8] sm:$0xff] %v864
        %897 = vst [vmem:[#allocation2 + $0xb0] sm:$0xff] %v865
        %898 = vst [vmem:[#allocation2 + $0xb8] sm:$0xff] %v866
        %899 = vst [vmem:[#allocation2 + $0xc0] sm:$0xff] %v867
        %900 = vst [vmem:[#allocation2 + $0xc8] sm:$0xff] %v868
        %901 = vst [vmem:[#allocation2 + $0xd0] sm:$0xff] %v869
        %902 = vst [vmem:[#allocation2 + $0xd8] sm:$0xff] %v870
        %903 = vst [vmem:[#allocation2 + $0xe0] sm:$0xff] %v871
        %904 = vst [vmem:[#allocation2 + $0xe8] sm:$0xff] %v872
        %905 = vst [vmem:[#allocation2 + $0xf0] sm:$0xff] %v873
        %906 = vst [vmem:[#allocation2 + $0xf8] sm:$0xff] %v874
        %p907 = scmp.eq.s32.totalorder %s22, 1
        // Predicated region
        $region74: #{_forward_impl.4} parent=64 // pred_check
          %p908 = pneg %p907
        $region75: #{_forward_impl.4} parent=64 // pred_check_branch
          %910 = sbr.rel (%p908) target = $region77
        $region76: #{_forward_impl.4} parent=64 // pred_region
          %v911 = vld [vmem:[#allocation2] sm:$0xff]
          %v912 = vld [vmem:[#allocation2 + $0x8] sm:$0xff]
          %v913 = vld [vmem:[#allocation2 + $0x10] sm:$0xff]
          %v914 = vld [vmem:[#allocation2 + $0x18] sm:$0xff]
          %v915 = vld [vmem:[#allocation2 + $0x20] sm:$0xff]
          %v916 = vld [vmem:[#allocation2 + $0x28] sm:$0xff]
          %v917 = vld [vmem:[#allocation2 + $0x30] sm:$0xff]
          %v918 = vld [vmem:[#allocation2 + $0x38] sm:$0xff]
          %v919 = vld [vmem:[#allocation2 + $0x40] sm:$0xff]
          %v920 = vld [vmem:[#allocation2 + $0x48] sm:$0xff]
          %v921 = vld [vmem:[#allocation2 + $0x50] sm:$0xff]
          %v922 = vld [vmem:[#allocation2 + $0x58] sm:$0xff]
          %v923 = vld [vmem:[#allocation2 + $0x60] sm:$0xff]
          %v924 = vld [vmem:[#allocation2 + $0x68] sm:$0xff]
          %v925 = vld [vmem:[#allocation2 + $0x70] sm:$0xff]
          %v926 = vld [vmem:[#allocation2 + $0x78] sm:$0xff]
          %v927 = vld [vmem:[#allocation2 + $0x80] sm:$0xff]
          %v928 = vld [vmem:[#allocation2 + $0x88] sm:$0xff]
          %v929 = vld [vmem:[#allocation2 + $0x90] sm:$0xff]
          %v930 = vld [vmem:[#allocation2 + $0x98] sm:$0xff]
          %v931 = vld [vmem:[#allocation2 + $0xa0] sm:$0xff]
          %v932 = vld [vmem:[#allocation2 + $0xa8] sm:$0xff]
          %v933 = vld [vmem:[#allocation2 + $0xb0] sm:$0xff]
          %v934 = vld [vmem:[#allocation2 + $0xb8] sm:$0xff]
          %v935 = vld [vmem:[#allocation2 + $0xc0] sm:$0xff]
          %v936 = vld [vmem:[#allocation2 + $0xc8] sm:$0xff]
          %v937 = vld [vmem:[#allocation2 + $0xd0] sm:$0xff]
          %v938 = vld [vmem:[#allocation2 + $0xd8] sm:$0xff]
          %v939 = vld [vmem:[#allocation2 + $0xe0] sm:$0xff]
          %v940 = vld [vmem:[#allocation2 + $0xe8] sm:$0xff]
          %v941 = vld [vmem:[#allocation2 + $0xf0] sm:$0xff]
          %v942 = vld [vmem:[#allocation2 + $0xf8] sm:$0xff]
          %943 = vst [vmem:[%s411] sm:$0xff] %v911
          %944 = vst [vmem:[%s411 + $0x8] sm:$0xff] %v912
          %945 = vst [vmem:[%s411 + $0x10] sm:$0xff] %v913
          %946 = vst [vmem:[%s411 + $0x18] sm:$0xff] %v914
          %947 = vst [vmem:[%s411 + $0x20] sm:$0xff] %v915
          %948 = vst [vmem:[%s411 + $0x28] sm:$0xff] %v916
          %949 = vst [vmem:[%s411 + $0x30] sm:$0xff] %v917
          %950 = vst [vmem:[%s411 + $0x38] sm:$0xff] %v918
          %951 = vst [vmem:[%s411 + $0x40] sm:$0xff] %v919
          %952 = vst [vmem:[%s411 + $0x48] sm:$0xff] %v920
          %953 = vst [vmem:[%s411 + $0x50] sm:$0xff] %v921
          %954 = vst [vmem:[%s411 + $0x58] sm:$0xff] %v922
          %955 = vst [vmem:[%s411 + $0x60] sm:$0xff] %v923
          %956 = vst [vmem:[%s411 + $0x68] sm:$0xff] %v924
          %957 = vst [vmem:[%s411 + $0x70] sm:$0xff] %v925
          %958 = vst [vmem:[%s411 + $0x78] sm:$0xff] %v926
          %959 = vst [vmem:[%s411 + $0x80] sm:$0xff] %v927
          %960 = vst [vmem:[%s411 + $0x88] sm:$0xff] %v928
          %961 = vst [vmem:[%s411 + $0x90] sm:$0xff] %v929
          %962 = vst [vmem:[%s411 + $0x98] sm:$0xff] %v930
          %963 = vst [vmem:[%s411 + $0xa0] sm:$0xff] %v931
          %964 = vst [vmem:[%s411 + $0xa8] sm:$0xff] %v932
          %965 = vst [vmem:[%s411 + $0xb0] sm:$0xff] %v933
          %966 = vst [vmem:[%s411 + $0xb8] sm:$0xff] %v934
          %967 = vst [vmem:[%s411 + $0xc0] sm:$0xff] %v935
          %968 = vst [vmem:[%s411 + $0xc8] sm:$0xff] %v936
          %969 = vst [vmem:[%s411 + $0xd0] sm:$0xff] %v937
          %970 = vst [vmem:[%s411 + $0xd8] sm:$0xff] %v938
          %971 = vst [vmem:[%s411 + $0xe0] sm:$0xff] %v939
          %972 = vst [vmem:[%s411 + $0xe8] sm:$0xff] %v940
          %973 = vst [vmem:[%s411 + $0xf0] sm:$0xff] %v941
          %974 = vst [vmem:[%s411 + $0xf8] sm:$0xff] %v942
          %v975 = vadd.f32 %v911, %v912
          %v976 = vadd.f32 %v975, %v913
          %v977 = vadd.f32 %v976, %v914
          %v978 = vadd.f32 %v977, %v915
          %v979 = vadd.f32 %v978, %v916
          %v980 = vadd.f32 %v979, %v917
          %v981 = vadd.f32 %v980, %v918
          %v982 = vadd.f32 %v981, %v919
          %v983 = vadd.f32 %v982, %v920
          %v984 = vadd.f32 %v983, %v921
          %v985 = vadd.f32 %v984, %v922
          %v986 = vadd.f32 %v985, %v923
          %v987 = vadd.f32 %v986, %v924
          %v988 = vadd.f32 %v987, %v925
          %v989 = vadd.f32 %v988, %v926
          %v990 = vadd.f32 %v989, %v927
          %v991 = vadd.f32 %v990, %v928
          %v992 = vadd.f32 %v991, %v929
          %v993 = vadd.f32 %v992, %v930
          %v994 = vadd.f32 %v993, %v931
          %v995 = vadd.f32 %v994, %v932
          %v996 = vadd.f32 %v995, %v933
          %v997 = vadd.f32 %v996, %v934
          %v998 = vadd.f32 %v997, %v935
          %v999 = vadd.f32 %v998, %v936
          %v1000 = vadd.f32 %v999, %v937
          %v1001 = vadd.f32 %v1000, %v938
          %v1002 = vadd.f32 %v1001, %v939
          %v1003 = vadd.f32 %v1002, %v940
          %v1004 = vadd.f32 %v1003, %v941
          %v1005 = vadd.f32 %v1004, %v942
          %v1006 = vrot.slane %v1005, 4
          %v1007 = vadd.f32 %v1005, %v1006
          %v1008 = vrot.slane %v1007, 2
          %v1009 = vadd.f32 %v1007, %v1008
          %v1010 = vrot.slane %v1009, 1
          %v1011 = vadd.f32 %v1009, %v1010
          %v1012 = vmul.f32 %v911, %v911
          %v1013 = vmul.f32 %v912, %v912
          %v1014 = vmul.f32 %v913, %v913
          %v1015 = vmul.f32 %v914, %v914
          %v1016 = vmul.f32 %v915, %v915
          %v1017 = vmul.f32 %v916, %v916
          %v1018 = vmul.f32 %v917, %v917
          %v1019 = vmul.f32 %v918, %v918
          %v1020 = vmul.f32 %v919, %v919
          %v1021 = vmul.f32 %v920, %v920
          %v1022 = vmul.f32 %v921, %v921
          %v1023 = vmul.f32 %v922, %v922
          %v1024 = vmul.f32 %v923, %v923
          %v1025 = vmul.f32 %v924, %v924
          %v1026 = vmul.f32 %v925, %v925
          %v1027 = vmul.f32 %v926, %v926
          %v1028 = vmul.f32 %v927, %v927
          %v1029 = vmul.f32 %v928, %v928
          %v1030 = vmul.f32 %v929, %v929
          %v1031 = vmul.f32 %v930, %v930
          %v1032 = vmul.f32 %v931, %v931
          %v1033 = vmul.f32 %v932, %v932
          %v1034 = vmul.f32 %v933, %v933
          %v1035 = vmul.f32 %v934, %v934
          %v1036 = vmul.f32 %v935, %v935
          %v1037 = vmul.f32 %v936, %v936
          %v1038 = vmul.f32 %v937, %v937
          %v1039 = vmul.f32 %v938, %v938
          %v1040 = vmul.f32 %v939, %v939
          %v1041 = vmul.f32 %v940, %v940
          %v1042 = vmul.f32 %v941, %v941
          %v1043 = vmul.f32 %v942, %v942
          %v1044 = vadd.f32 %v1012, %v1013
          %v1045 = vadd.f32 %v1044, %v1014
          %v1046 = vadd.f32 %v1045, %v1015
          %v1047 = vadd.f32 %v1046, %v1016
          %v1048 = vadd.f32 %v1047, %v1017
          %v1049 = vadd.f32 %v1048, %v1018
          %v1050 = vadd.f32 %v1049, %v1019
          %v1051 = vadd.f32 %v1050, %v1020
          %v1052 = vadd.f32 %v1051, %v1021
          %v1053 = vadd.f32 %v1052, %v1022
          %v1054 = vadd.f32 %v1053, %v1023
          %v1055 = vadd.f32 %v1054, %v1024
          %v1056 = vadd.f32 %v1055, %v1025
          %v1057 = vadd.f32 %v1056, %v1026
          %v1058 = vadd.f32 %v1057, %v1027
          %v1059 = vadd.f32 %v1058, %v1028
          %v1060 = vadd.f32 %v1059, %v1029
          %v1061 = vadd.f32 %v1060, %v1030
          %v1062 = vadd.f32 %v1061, %v1031
          %v1063 = vadd.f32 %v1062, %v1032
          %v1064 = vadd.f32 %v1063, %v1033
          %v1065 = vadd.f32 %v1064, %v1034
          %v1066 = vadd.f32 %v1065, %v1035
          %v1067 = vadd.f32 %v1066, %v1036
          %v1068 = vadd.f32 %v1067, %v1037
          %v1069 = vadd.f32 %v1068, %v1038
          %v1070 = vadd.f32 %v1069, %v1039
          %v1071 = vadd.f32 %v1070, %v1040
          %v1072 = vadd.f32 %v1071, %v1041
          %v1073 = vadd.f32 %v1072, %v1042
          %v1074 = vadd.f32 %v1073, %v1043
          %v1075 = vrot.slane %v1074, 4
          %v1076 = vadd.f32 %v1074, %v1075
          %v1077 = vrot.slane %v1076, 2
          %v1078 = vadd.f32 %v1076, %v1077
          %v1079 = vrot.slane %v1078, 1
          %v1080 = vadd.f32 %v1078, %v1079
          %v1081 = vlaneseq
          %v1082 = vshrl.u32 %v1081, 7
          %vm1083 = vcmp.eq.s32.totalorder %v1082, 0
          %vm1084 = vcmp.eq.s32.totalorder %v1082, 1
          %v1085 = vsel %vm1084, %v1080, 0.0
          %v1086 = vsel %vm1083, %v1011, %v1085
          %1087 = vst [vmem:[%s420] sm:$0xff] %v1086
        $region77: #{_forward_impl.4} parent=64 // pred_fallthru
          _
        %s1088 = smul.u32 32, %s21
        %p1089 = scmp.lt.s32.totalorder %s20, 1
        %s1090 = scalar_select %p1089, %s20, 1
        %p1091 = scmp.lt.s32.totalorder %s1088, 63
        %s1092 = scalar_select %p1091, %s1088, 63
        %s1093 = smul.addr %s1090, 64
        %s1094 = sadd.s32 %s1092, %s1093
        %s1095 = smul.addr %s1094, 8
        %s1096 = scalar_lea.vmem %s2, %s1095
        %p1097 = scmp.lt.s32.totalorder %s20, 1
        %s1098 = scalar_select %p1097, %s20, 1
        %p1099 = scmp.lt.s32.totalorder %s21, 1
        %s1100 = scalar_select %p1099, %s21, 1
        %s1101 = smul.addr %s1098, 2
        %s1102 = sadd.s32 %s1100, %s1101
        %s1103 = smul.addr %s1102, 8
        %s1104 = scalar_lea.vmem %s3, %s1103
        // Predicated region
        $region78: #{_forward_impl.4} parent=64 // pred_check
          %p1105 = pneg %p110
        $region79: #{_forward_impl.4} parent=64 // pred_check_branch
          %1107 = sbr.rel (%p1105) target = $region81
        $region80: #{_forward_impl.4} parent=64 // pred_region
          %s1108 = smul.u32 32, %s21
        $region81: #{_forward_impl.4} parent=64 // pred_fallthru
          _
        // Predicated region
        $region82: #{_forward_impl.4} parent=64 // pred_check
          %p1109 = pneg %p138
        $region83: #{_forward_impl.4} parent=64 // pred_check_branch
          %1111 = sbr.rel (%p1109) target = $region85
        $region84: #{_forward_impl.4} parent=64 // pred_region
          _
        $region85: #{_forward_impl.4} parent=64 // pred_fallthru
          _
      $region65: #{_forward_impl.4} parent=5 // pred_fallthru
        _
      %p1112 = scmp.le.s32.totalorder 2, %s10
      // Predicated region
      $region86: #{_forward_impl.4} parent=5 // pred_check
        %p1113 = pneg %p1112
      $region87: #{_forward_impl.4} parent=5 // pred_check_branch
        %1115 = sbr.rel (%p1113) target = $region89
      $region88: #{_forward_impl.4} parent=5 // pred_region
        %s1116 = ssub.s32 %s10, 2
        // Predicated region
        $region90: #{_forward_impl.4} parent=88 // pred_check
          %p1117 = pneg %p116
        $region91: #{_forward_impl.4} parent=88 // pred_check_branch
          %1119 = sbr.rel (%p1117) target = $region93
        $region92: #{_forward_impl.4} parent=88 // pred_region
          %s1120 = smul.u32 32, %s24
          %p1121 = scmp.lt.s32.totalorder %s23, 1
          %s1122 = scalar_select %p1121, %s23, 1
          %p1123 = scmp.lt.s32.totalorder %s1120, 63
          %s1124 = scalar_select %p1123, %s1120, 63
          %s1125 = smul.addr %s1122, 64
          %s1126 = sadd.s32 %s1124, %s1125
          %s1127 = smul.addr %s1126, 8
          %s1128 = scalar_lea.vmem %s2, %s1127
        $region93: #{_forward_impl.4} parent=88 // pred_fallthru
          _
        // Predicated region
        $region94: #{_forward_impl.4} parent=88 // pred_check
          %p1129 = pneg %p144
        $region95: #{_forward_impl.4} parent=88 // pred_check_branch
          %1131 = sbr.rel (%p1129) target = $region97
        $region96: #{_forward_impl.4} parent=88 // pred_region
          %p1132 = scmp.lt.s32.totalorder %s23, 1
          %s1133 = scalar_select %p1132, %s23, 1
          %p1134 = scmp.lt.s32.totalorder %s24, 1
          %s1135 = scalar_select %p1134, %s24, 1
          %s1136 = smul.addr %s1133, 2
          %s1137 = sadd.s32 %s1135, %s1136
          %s1138 = smul.addr %s1137, 8
          %s1139 = scalar_lea.vmem %s3, %s1138
        $region97: #{_forward_impl.4} parent=88 // pred_fallthru
          _
      $region89: #{_forward_impl.4} parent=5 // pred_fallthru
        _
    $region6: #{_forward_impl.4} parent=1 // loop_footer
      %s14 = sadd.s32 1, %s10
    $region7: #{_forward_impl.4} parent=1 // loop_footer_branch
      %9 = sbr.rel target = $region3
    $region8: #{_forward_impl.4} parent=1 // loop_exit
      _

// kernel: _forward_impl.5
$region0: #{_forward_impl.5}
  #allocation0 [shape = 'u32[]', space=smem, size = 0x4, offset = 0x4, fixed_abs, tag = 'smem constant byte address 0x4 - core index']
  #allocation1 [shape = 'u32[144,128]{1,0:T(1,128)}', space=vmem, size = 0x12000, scoped, tag = 'internal scratch']
  %s0 = inlined_call_operand.vmem [shape: f32[2,512,128], index: 0, kind: input, shape index: {}]
  %s1 = inlined_call_operand.vmem [shape: f32[2,1,128], index: 1, kind: input, shape index: {}]
  %s2 = inlined_call_operand.vmem [shape: f32[2,1,128], index: 2, kind: input, shape index: {}]
  %s3 = inlined_call_operand.vmem [shape: bf16[2,512,128], index: 3, kind: output, shape index: {}]
  %s4 = sld [smem:[#allocation0]]
  $region45: #{_forward_impl.5} parent=0
    _
  %s6 = ssub.s32 1, %s4
  %s7 = scalar_select 0, %s6, %s4
  loop: start=0, step=1, limit=6
  $region2: #{_forward_impl.5} parent=0 // loop_pre_header
    _
  $region3: #{_forward_impl.5} parent=0 // loop_header
    %s9 = sphi 0, %s13
    %p10 = scmp.ge.s32.totalorder %s9, 6
    %s16 = sphi 0, %s28
    %s17 = sphi 0, %s24
    %s18 = sphi 0, %s16
    %s19 = sphi 0, %s17
    %s20 = sphi 0, %s18
    %s21 = sphi 0, %s19
    %s33 = sphi 0, %s35
    %s36 = sphi 0, %s33
    %s37 = sphi 0, %s36
    %s53 = sphi 0, %s37
    %s59 = sphi 0, %s61
    %s62 = sphi 0, %s59
    %s63 = sphi 0, %s62
    %s79 = sphi 0, %s63
    %s85 = sphi 0, %s87
    %s88 = sphi 0, %s85
    %s89 = sphi 0, %s88
    %s105 = sphi 0, %s89
    %s113 = sphi 0, %s115
    %s116 = sphi 0, %s113
    %s117 = sphi 0, %s116
    %s133 = sphi 0, %s117
  $region4: #{_forward_impl.5} parent=0 // loop_header_branch
    %12 = sbr.rel (%p10) target = $region8
  $region5: #{_forward_impl.5} parent=0 // loop_body
    %s14 = ssub.s32 %s9, 1
    %s15 = ssub.s32 %s9, 2
    %s22 = sadd.s32 1, %s17
    %p23 = scmp.ge.s32.totalorder %s22, 2
    %s24 = scalar_select %p23, 0, %s22
    %s25 = sadd.s32 1, %s16
    %s26 = scalar_select %p23, %s25, %s16
    %p27 = scmp.ge.s32.totalorder %s26, 2
    %s28 = scalar_select %p27, 0, %s26
    %s29 = ssub.s32 %s16, %s28
    %s30 = ssub.s32 %s17, %s24
    %s31 = sor.u32 %s29, %s30
    %p32 = scmp.eq.s32.totalorder %s31, 0
    %s34 = sadd.s32 %s33, 1
    %s35 = scalar_select %p32, %s33, %s34
    %p38 = pneg %p32
    %p39 = scmp.eq.s32.totalorder %s9, 3
    %p40 = por %p38, %p39
    %p41 = scmp.ne.s32.totalorder %s33, %s36
    %p42 = scmp.eq.s32.totalorder %s9, 0
    %p43 = por %p41, %p42
    %p44 = scmp.ne.s32.totalorder %s33, %s36
    %p45 = scmp.eq.s32.totalorder %s14, 3
    %p46 = por %p44, %p45
    %p47 = scmp.ne.s32.totalorder %s36, %s37
    %p48 = scmp.eq.s32.totalorder %s14, 0
    %p49 = por %p47, %p48
    %p50 = scmp.ne.s32.totalorder %s36, %s37
    %p51 = scmp.eq.s32.totalorder %s15, 3
    %p52 = por %p50, %p51
    %p54 = scmp.ne.s32.totalorder %s37, %s53
    %p55 = scmp.eq.s32.totalorder %s15, 0
    %p56 = por %p54, %p55
    %s57 = ssub.s32 %s16, %s28
    %p58 = scmp.eq.s32.totalorder %s57, 0
    %s60 = sadd.s32 %s59, 1
    %s61 = scalar_select %p58, %s59, %s60
    %p64 = pneg %p58
    %p65 = scmp.eq.s32.totalorder %s9, 3
    %p66 = por %p64, %p65
    %p67 = scmp.ne.s32.totalorder %s59, %s62
    %p68 = scmp.eq.s32.totalorder %s9, 0
    %p69 = por %p67, %p68
    %p70 = scmp.ne.s32.totalorder %s59, %s62
    %p71 = scmp.eq.s32.totalorder %s14, 3
    %p72 = por %p70, %p71
    %p73 = scmp.ne.s32.totalorder %s62, %s63
    %p74 = scmp.eq.s32.totalorder %s14, 0
    %p75 = por %p73, %p74
    %p76 = scmp.ne.s32.totalorder %s62, %s63
    %p77 = scmp.eq.s32.totalorder %s15, 3
    %p78 = por %p76, %p77
    %p80 = scmp.ne.s32.totalorder %s63, %s79
    %p81 = scmp.eq.s32.totalorder %s15, 0
    %p82 = por %p80, %p81
    %s83 = ssub.s32 %s16, %s28
    %p84 = scmp.eq.s32.totalorder %s83, 0
    %s86 = sadd.s32 %s85, 1
    %s87 = scalar_select %p84, %s85, %s86
    %p90 = pneg %p84
    %p91 = scmp.eq.s32.totalorder %s9, 3
    %p92 = por %p90, %p91
    %p93 = scmp.ne.s32.totalorder %s85, %s88
    %p94 = scmp.eq.s32.totalorder %s9, 0
    %p95 = por %p93, %p94
    %p96 = scmp.ne.s32.totalorder %s85, %s88
    %p97 = scmp.eq.s32.totalorder %s14, 3
    %p98 = por %p96, %p97
    %p99 = scmp.ne.s32.totalorder %s88, %s89
    %p100 = scmp.eq.s32.totalorder %s14, 0
    %p101 = por %p99, %p100
    %p102 = scmp.ne.s32.totalorder %s88, %s89
    %p103 = scmp.eq.s32.totalorder %s15, 3
    %p104 = por %p102, %p103
    %p106 = scmp.ne.s32.totalorder %s89, %s105
    %p107 = scmp.eq.s32.totalorder %s15, 0
    %p108 = por %p106, %p107
    %s109 = ssub.s32 %s16, %s28
    %s110 = ssub.s32 %s17, %s24
    %s111 = sor.u32 %s109, %s110
    %p112 = scmp.eq.s32.totalorder %s111, 0
    %s114 = sadd.s32 %s113, 1
    %s115 = scalar_select %p112, %s113, %s114
    %p118 = pneg %p112
    %p119 = scmp.eq.s32.totalorder %s9, 3
    %p120 = por %p118, %p119
    %p121 = scmp.ne.s32.totalorder %s113, %s116
    %p122 = scmp.eq.s32.totalorder %s9, 0
    %p123 = por %p121, %p122
    %p124 = scmp.ne.s32.totalorder %s113, %s116
    %p125 = scmp.eq.s32.totalorder %s14, 3
    %p126 = por %p124, %p125
    %p127 = scmp.ne.s32.totalorder %s116, %s117
    %p128 = scmp.eq.s32.totalorder %s14, 0
    %p129 = por %p127, %p128
    %p130 = scmp.ne.s32.totalorder %s116, %s117
    %p131 = scmp.eq.s32.totalorder %s15, 3
    %p132 = por %p130, %p131
    %p134 = scmp.ne.s32.totalorder %s117, %s133
    %p135 = scmp.eq.s32.totalorder %s15, 0
    %p136 = por %p134, %p135
    %p137 = scmp.le.s32.totalorder 1, %s9
    %p138 = scmp.lt.s32.totalorder %s9, 5
    %p139 = pnand %p137, %p138
    %p140 = pneg %p139
    // Predicated region
    $region9: #{_forward_impl.5} parent=5 // pred_check
      _
    $region10: #{_forward_impl.5} parent=5 // pred_check_branch
      %142 = sbr.rel (%p139) target = $region12
    $region11: #{_forward_impl.5} parent=5 // pred_region
      %s143 = ssub.s32 %s9, 1
    $region12: #{_forward_impl.5} parent=5 // pred_fallthru
      _
    %p144 = scmp.lt.s32.totalorder %s9, 4
    // Predicated region
    $region13: #{_forward_impl.5} parent=5 // pred_check
      %p145 = pneg %p144
    $region14: #{_forward_impl.5} parent=5 // pred_check_branch
      %147 = sbr.rel (%p145) target = $region16
    $region15: #{_forward_impl.5} parent=5 // pred_region
      // Predicated region
      $region17: #{_forward_impl.5} parent=15 // pred_check
        %p148 = pneg %p43
      $region18: #{_forward_impl.5} parent=15 // pred_check_branch
        %150 = sbr.rel (%p148) target = $region20
      $region19: #{_forward_impl.5} parent=15 // pred_region
        %s151 = smul.u32 32, %s17
        %p152 = scmp.lt.s32.totalorder %s16, 1
        %s153 = scalar_select %p152, %s16, 1
        %p154 = scmp.lt.s32.totalorder %s151, 63
        %s155 = scalar_select %p154, %s151, 63
        %s156 = smul.addr %s153, 64
        %s157 = sadd.s32 %s155, %s156
        %s158 = smul.addr %s157, 8
        %s159 = scalar_lea.vmem %s0, %s158
        %s160 = smul.u32 32, %s17
      $region20: #{_forward_impl.5} parent=15 // pred_fallthru
        _
      // Predicated region
      $region21: #{_forward_impl.5} parent=15 // pred_check
        %p161 = pneg %p69
      $region22: #{_forward_impl.5} parent=15 // pred_check_branch
        %163 = sbr.rel (%p161) target = $region24
      $region23: #{_forward_impl.5} parent=15 // pred_region
        %p164 = scmp.lt.s32.totalorder %s16, 1
        %s165 = scalar_select %p164, %s16, 1
        %s166 = scalar_lea.vmem %s1, %s165
      $region24: #{_forward_impl.5} parent=15 // pred_fallthru
        _
      // Predicated region
      $region25: #{_forward_impl.5} parent=15 // pred_check
        %p167 = pneg %p95
      $region26: #{_forward_impl.5} parent=15 // pred_check_branch
        %169 = sbr.rel (%p167) target = $region28
      $region27: #{_forward_impl.5} parent=15 // pred_region
        %p170 = scmp.lt.s32.totalorder %s16, 1
        %s171 = scalar_select %p170, %s16, 1
        %s172 = scalar_lea.vmem %s2, %s171
      $region28: #{_forward_impl.5} parent=15 // pred_fallthru
        _
    $region16: #{_forward_impl.5} parent=5 // pred_fallthru
      _
    %p173 = scmp.le.s32.totalorder 1, %s9
    %p174 = scmp.lt.s32.totalorder %s9, 5
    %p175 = pnand %p173, %p174
    %p176 = pneg %p175
    // Predicated region
    $region29: #{_forward_impl.5} parent=5 // pred_check
      _
    $region30: #{_forward_impl.5} parent=5 // pred_check_branch
      %178 = sbr.rel (%p175) target = $region32
    $region31: #{_forward_impl.5} parent=5 // pred_region
      %s179 = ssub.s32 %s9, 1
      %s180 = smul.u32 32, %s19
      %p181 = scmp.lt.s32.totalorder %s18, 1
      %s182 = scalar_select %p181, %s18, 1
      %p183 = scmp.lt.s32.totalorder %s180, 63
      %s184 = scalar_select %p183, %s180, 63
      %s185 = smul.addr %s182, 64
      %s186 = sadd.s32 %s184, %s185
      %s187 = smul.addr %s186, 8
      %s188 = scalar_lea.vmem %s0, %s187
      %p189 = pneg %p49
      %p190 = pneg %p46
      %p191 = scmp.lt.s32.totalorder %s18, 1
      %s192 = scalar_select %p191, %s18, 1
      %s193 = scalar_lea.vmem %s1, %s192
      %p194 = pneg %p75
      %p195 = pneg %p72
      %p196 = scmp.lt.s32.totalorder %s18, 1
      %s197 = scalar_select %p196, %s18, 1
      %s198 = scalar_lea.vmem %s2, %s197
      %p199 = pneg %p101
      %p200 = pneg %p98
      %p201 = pneg %p129
      %p202 = pneg %p126
      %s203 = smul.u32 32, %s19
      %p204 = scmp.lt.s32.totalorder %s18, 1
      %s205 = scalar_select %p204, %s18, 1
      %p206 = scmp.lt.s32.totalorder %s203, 63
      %s207 = scalar_select %p206, %s203, 63
      %s208 = smul.addr %s205, 64
      %s209 = sadd.s32 %s207, %s208
      %s210 = smul.addr %s209, 4
      %s211 = scalar_lea.vmem %s3, %s210
      %s212 = smul.u32 32, %s19
      %p213 = scmp.lt.s32.totalorder %s18, 1
      %s214 = scalar_select %p213, %s18, 1
      %p215 = scmp.lt.s32.totalorder %s212, 63
      %s216 = scalar_select %p215, %s212, 63
      %s217 = smul.addr %s214, 64
      %s218 = sadd.s32 %s216, %s217
      %s219 = smul.addr %s218, 8
      %s220 = scalar_lea.vmem %s0, %s219
      %s221 = smul.u32 32, %s19
      %p222 = scmp.lt.s32.totalorder %s18, 1
      %s223 = scalar_select %p222, %s18, 1
      %s224 = scalar_lea.vmem %s1, %s223
      %p225 = scmp.lt.s32.totalorder %s18, 1
      %s226 = scalar_select %p225, %s18, 1
      %s227 = scalar_lea.vmem %s2, %s226
      %s228 = smul.u32 32, %s19
      %p229 = scmp.lt.s32.totalorder %s18, 1
      %s230 = scalar_select %p229, %s18, 1
      %p231 = scmp.lt.s32.totalorder %s228, 63
      %s232 = scalar_select %p231, %s228, 63
      %s233 = smul.addr %s230, 64
      %s234 = sadd.s32 %s232, %s233
      %s235 = smul.addr %s234, 4
      %s236 = scalar_lea.vmem %s3, %s235
      %s237 = smul.u32 32, %s19
      %v238 = vld [vmem:[%s220] sm:$0xff]
      %v239 = vld [vmem:[%s220 + $0x8] sm:$0xff]
      %v240 = vld [vmem:[%s220 + $0x10] sm:$0xff]
      %v241 = vld [vmem:[%s220 + $0x18] sm:$0xff]
      %v242 = vld [vmem:[%s220 + $0x20] sm:$0xff]
      %v243 = vld [vmem:[%s220 + $0x28] sm:$0xff]
      %v244 = vld [vmem:[%s220 + $0x30] sm:$0xff]
      %v245 = vld [vmem:[%s220 + $0x38] sm:$0xff]
      %v246 = vld [vmem:[%s220 + $0x40] sm:$0xff]
      %v247 = vld [vmem:[%s220 + $0x48] sm:$0xff]
      %v248 = vld [vmem:[%s220 + $0x50] sm:$0xff]
      %v249 = vld [vmem:[%s220 + $0x58] sm:$0xff]
      %v250 = vld [vmem:[%s220 + $0x60] sm:$0xff]
      %v251 = vld [vmem:[%s220 + $0x68] sm:$0xff]
      %v252 = vld [vmem:[%s220 + $0x70] sm:$0xff]
      %v253 = vld [vmem:[%s220 + $0x78] sm:$0xff]
      %v254 = vld [vmem:[%s220 + $0x80] sm:$0xff]
      %v255 = vld [vmem:[%s220 + $0x88] sm:$0xff]
      %v256 = vld [vmem:[%s220 + $0x90] sm:$0xff]
      %v257 = vld [vmem:[%s220 + $0x98] sm:$0xff]
      %v258 = vld [vmem:[%s220 + $0xa0] sm:$0xff]
      %v259 = vld [vmem:[%s220 + $0xa8] sm:$0xff]
      %v260 = vld [vmem:[%s220 + $0xb0] sm:$0xff]
      %v261 = vld [vmem:[%s220 + $0xb8] sm:$0xff]
      %v262 = vld [vmem:[%s220 + $0xc0] sm:$0xff]
      %v263 = vld [vmem:[%s220 + $0xc8] sm:$0xff]
      %v264 = vld [vmem:[%s220 + $0xd0] sm:$0xff]
      %v265 = vld [vmem:[%s220 + $0xd8] sm:$0xff]
      %v266 = vld [vmem:[%s220 + $0xe0] sm:$0xff]
      %v267 = vld [vmem:[%s220 + $0xe8] sm:$0xff]
      %v268 = vld [vmem:[%s220 + $0xf0] sm:$0xff]
      %v269 = vld [vmem:[%s220 + $0xf8] sm:$0xff]
      %v270 = vld [vmem:[%s224] sm:$0x1]
      %v272 = vlaneseq
      %v273 = vshrl.u32 %v272, 7
      %v274 = vsub.s32 0, %v273
      %v275 = vrot.slane %v270, %v274
      %v277 = vmul.f32 %v238, %v275
      %v278 = vmul.f32 %v239, %v275
      %v279 = vmul.f32 %v240, %v275
      %v280 = vmul.f32 %v241, %v275
      %v281 = vmul.f32 %v242, %v275
      %v282 = vmul.f32 %v243, %v275
      %v283 = vmul.f32 %v244, %v275
      %v284 = vmul.f32 %v245, %v275
      %v285 = vmul.f32 %v246, %v275
      %v286 = vmul.f32 %v247, %v275
      %v287 = vmul.f32 %v248, %v275
      %v288 = vmul.f32 %v249, %v275
      %v289 = vmul.f32 %v250, %v275
      %v290 = vmul.f32 %v251, %v275
      %v291 = vmul.f32 %v252, %v275
      %v292 = vmul.f32 %v253, %v275
      %v293 = vmul.f32 %v254, %v275
      %v294 = vmul.f32 %v255, %v275
      %v295 = vmul.f32 %v256, %v275
      %v296 = vmul.f32 %v257, %v275
      %v297 = vmul.f32 %v258, %v275
      %v298 = vmul.f32 %v259, %v275
      %v299 = vmul.f32 %v260, %v275
      %v300 = vmul.f32 %v261, %v275
      %v301 = vmul.f32 %v262, %v275
      %v302 = vmul.f32 %v263, %v275
      %v303 = vmul.f32 %v264, %v275
      %v304 = vmul.f32 %v265, %v275
      %v305 = vmul.f32 %v266, %v275
      %v306 = vmul.f32 %v267, %v275
      %v307 = vmul.f32 %v268, %v275
      %v308 = vmul.f32 %v269, %v275
      %v309 = vld [vmem:[%s227] sm:$0x1]
      %v311 = vlaneseq
      %v312 = vshrl.u32 %v311, 7
      %v313 = vsub.s32 0, %v312
      %v314 = vrot.slane %v309, %v313
      %v316 = vadd.f32 %v277, %v314
      %v317 = vadd.f32 %v278, %v314
      %v318 = vadd.f32 %v279, %v314
      %v319 = vadd.f32 %v280, %v314
      %v320 = vadd.f32 %v281, %v314
      %v321 = vadd.f32 %v282, %v314
      %v322 = vadd.f32 %v283, %v314
      %v323 = vadd.f32 %v284, %v314
      %v324 = vadd.f32 %v285, %v314
      %v325 = vadd.f32 %v286, %v314
      %v326 = vadd.f32 %v287, %v314
      %v327 = vadd.f32 %v288, %v314
      %v328 = vadd.f32 %v289, %v314
      %v329 = vadd.f32 %v290, %v314
      %v330 = vadd.f32 %v291, %v314
      %v331 = vadd.f32 %v292, %v314
      %v332 = vadd.f32 %v293, %v314
      %v333 = vadd.f32 %v294, %v314
      %v334 = vadd.f32 %v295, %v314
      %v335 = vadd.f32 %v296, %v314
      %v336 = vadd.f32 %v297, %v314
      %v337 = vadd.f32 %v298, %v314
      %v338 = vadd.f32 %v299, %v314
      %v339 = vadd.f32 %v300, %v314
      %v340 = vadd.f32 %v301, %v314
      %v341 = vadd.f32 %v302, %v314
      %v342 = vadd.f32 %v303, %v314
      %v343 = vadd.f32 %v304, %v314
      %v344 = vadd.f32 %v305, %v314
      %v345 = vadd.f32 %v306, %v314
      %v346 = vadd.f32 %v307, %v314
      %v347 = vadd.f32 %v308, %v314
      %vm348 = vcmp.ge.f32.partialorder %v316, 0.0
      %vm349 = vcmp.ge.f32.partialorder %v317, 0.0
      %vm350 = vcmp.ge.f32.partialorder %v318, 0.0
      %vm351 = vcmp.ge.f32.partialorder %v319, 0.0
      %vm352 = vcmp.ge.f32.partialorder %v320, 0.0
      %vm353 = vcmp.ge.f32.partialorder %v321, 0.0
      %vm354 = vcmp.ge.f32.partialorder %v322, 0.0
      %vm355 = vcmp.ge.f32.partialorder %v323, 0.0
      %vm356 = vcmp.ge.f32.partialorder %v324, 0.0
      %vm357 = vcmp.ge.f32.partialorder %v325, 0.0
      %vm358 = vcmp.ge.f32.partialorder %v326, 0.0
      %vm359 = vcmp.ge.f32.partialorder %v327, 0.0
      %vm360 = vcmp.ge.f32.partialorder %v328, 0.0
      %vm361 = vcmp.ge.f32.partialorder %v329, 0.0
      %vm362 = vcmp.ge.f32.partialorder %v330, 0.0
      %vm363 = vcmp.ge.f32.partialorder %v331, 0.0
      %vm364 = vcmp.ge.f32.partialorder %v332, 0.0
      %vm365 = vcmp.ge.f32.partialorder %v333, 0.0
      %vm366 = vcmp.ge.f32.partialorder %v334, 0.0
      %vm367 = vcmp.ge.f32.partialorder %v335, 0.0
      %vm368 = vcmp.ge.f32.partialorder %v336, 0.0
      %vm369 = vcmp.ge.f32.partialorder %v337, 0.0
      %vm370 = vcmp.ge.f32.partialorder %v338, 0.0
      %vm371 = vcmp.ge.f32.partialorder %v339, 0.0
      %vm372 = vcmp.ge.f32.partialorder %v340, 0.0
      %vm373 = vcmp.ge.f32.partialorder %v341, 0.0
      %vm374 = vcmp.ge.f32.partialorder %v342, 0.0
      %vm375 = vcmp.ge.f32.partialorder %v343, 0.0
      %vm376 = vcmp.ge.f32.partialorder %v344, 0.0
      %vm377 = vcmp.ge.f32.partialorder %v345, 0.0
      %vm378 = vcmp.ge.f32.partialorder %v346, 0.0
      %vm379 = vcmp.ge.f32.partialorder %v347, 0.0
      %v380 = vmul.f32 %v316, 0.01
      %v381 = vmul.f32 %v317, 0.01
      %v382 = vmul.f32 %v318, 0.01
      %v383 = vmul.f32 %v319, 0.01
      %v384 = vmul.f32 %v320, 0.01
      %v385 = vmul.f32 %v321, 0.01
      %v386 = vmul.f32 %v322, 0.01
      %v387 = vmul.f32 %v323, 0.01
      %v388 = vmul.f32 %v324, 0.01
      %v389 = vmul.f32 %v325, 0.01
      %v390 = vmul.f32 %v326, 0.01
      %v391 = vmul.f32 %v327, 0.01
      %v392 = vmul.f32 %v328, 0.01
      %v393 = vmul.f32 %v329, 0.01
      %v394 = vmul.f32 %v330, 0.01
      %v395 = vmul.f32 %v331, 0.01
      %v396 = vmul.f32 %v332, 0.01
      %v397 = vmul.f32 %v333, 0.01
      %v398 = vmul.f32 %v334, 0.01
      %v399 = vmul.f32 %v335, 0.01
      %v400 = vmul.f32 %v336, 0.01
      %v401 = vmul.f32 %v337, 0.01
      %v402 = vmul.f32 %v338, 0.01
      %v403 = vmul.f32 %v339, 0.01
      %v404 = vmul.f32 %v340, 0.01
      %v405 = vmul.f32 %v341, 0.01
      %v406 = vmul.f32 %v342, 0.01
      %v407 = vmul.f32 %v343, 0.01
      %v408 = vmul.f32 %v344, 0.01
      %v409 = vmul.f32 %v345, 0.01
      %v410 = vmul.f32 %v346, 0.01
      %v411 = vmul.f32 %v347, 0.01
      %v412 = vsel %vm348, %v316, %v380
      %v413 = vsel %vm349, %v317, %v381
      %v414 = vsel %vm350, %v318, %v382
      %v415 = vsel %vm351, %v319, %v383
      %v416 = vsel %vm352, %v320, %v384
      %v417 = vsel %vm353, %v321, %v385
      %v418 = vsel %vm354, %v322, %v386
      %v419 = vsel %vm355, %v323, %v387
      %v420 = vsel %vm356, %v324, %v388
      %v421 = vsel %vm357, %v325, %v389
      %v422 = vsel %vm358, %v326, %v390
      %v423 = vsel %vm359, %v327, %v391
      %v424 = vsel %vm360, %v328, %v392
      %v425 = vsel %vm361, %v329, %v393
      %v426 = vsel %vm362, %v330, %v394
      %v427 = vsel %vm363, %v331, %v395
      %v428 = vsel %vm364, %v332, %v396
      %v429 = vsel %vm365, %v333, %v397
      %v430 = vsel %vm366, %v334, %v398
      %v431 = vsel %vm367, %v335, %v399
      %v432 = vsel %vm368, %v336, %v400
      %v433 = vsel %vm369, %v337, %v401
      %v434 = vsel %vm370, %v338, %v402
      %v435 = vsel %vm371, %v339, %v403
      %v436 = vsel %vm372, %v340, %v404
      %v437 = vsel %vm373, %v341, %v405
      %v438 = vsel %vm374, %v342, %v406
      %v439 = vsel %vm375, %v343, %v407
      %v440 = vsel %vm376, %v344, %v408
      %v441 = vsel %vm377, %v345, %v409
      %v442 = vsel %vm378, %v346, %v410
      %v443 = vsel %vm379, %v347, %v411
      %v444 = vpack.c.bf16 %v413, %v412
      %v445 = vpack.c.bf16 %v415, %v414
      %v446 = vpack.c.bf16 %v417, %v416
      %v447 = vpack.c.bf16 %v419, %v418
      %v448 = vpack.c.bf16 %v421, %v420
      %v449 = vpack.c.bf16 %v423, %v422
      %v450 = vpack.c.bf16 %v425, %v424
      %v451 = vpack.c.bf16 %v427, %v426
      %v452 = vpack.c.bf16 %v429, %v428
      %v453 = vpack.c.bf16 %v431, %v430
      %v454 = vpack.c.bf16 %v433, %v432
      %v455 = vpack.c.bf16 %v435, %v434
      %v456 = vpack.c.bf16 %v437, %v436
      %v457 = vpack.c.bf16 %v439, %v438
      %v458 = vpack.c.bf16 %v441, %v440
      %v459 = vpack.c.bf16 %v443, %v442
      %v476 = vunpack.c.l.b16 %v444
      %v477 = vunpack.c.h.b16 %v444
      %v478 = vunpack.c.l.b16 %v445
      %v479 = vunpack.c.h.b16 %v445
      %v480 = vunpack.c.l.b16 %v446
      %v481 = vunpack.c.h.b16 %v446
      %v482 = vunpack.c.l.b16 %v447
      %v483 = vunpack.c.h.b16 %v447
      %v484 = vunpack.c.l.b16 %v448
      %v485 = vunpack.c.h.b16 %v448
      %v486 = vunpack.c.l.b16 %v449
      %v487 = vunpack.c.h.b16 %v449
      %v488 = vunpack.c.l.b16 %v450
      %v489 = vunpack.c.h.b16 %v450
      %v490 = vunpack.c.l.b16 %v451
      %v491 = vunpack.c.h.b16 %v451
      %v492 = vunpack.c.l.b16 %v452
      %v493 = vunpack.c.h.b16 %v452
      %v494 = vunpack.c.l.b16 %v453
      %v495 = vunpack.c.h.b16 %v453
      %v496 = vunpack.c.l.b16 %v454
      %v497 = vunpack.c.h.b16 %v454
      %v498 = vunpack.c.l.b16 %v455
      %v499 = vunpack.c.h.b16 %v455
      %v500 = vunpack.c.l.b16 %v456
      %v501 = vunpack.c.h.b16 %v456
      %v502 = vunpack.c.l.b16 %v457
      %v503 = vunpack.c.h.b16 %v457
      %v504 = vunpack.c.l.b16 %v458
      %v505 = vunpack.c.h.b16 %v458
      %v506 = vunpack.c.l.b16 %v459
      %v507 = vunpack.c.h.b16 %v459
      %v508 = vpack.c.b16 %v476, %v476
      %v509 = vpack.c.b16 %v477, %v477
      %v510 = vpack.c.b16 %v478, %v478
      %v511 = vpack.c.b16 %v479, %v479
      %v512 = vpack.c.b16 %v480, %v480
      %v513 = vpack.c.b16 %v481, %v481
      %v514 = vpack.c.b16 %v482, %v482
      %v515 = vpack.c.b16 %v483, %v483
      %v516 = vpack.c.b16 %v484, %v484
      %v517 = vpack.c.b16 %v485, %v485
      %v518 = vpack.c.b16 %v486, %v486
      %v519 = vpack.c.b16 %v487, %v487
      %v520 = vpack.c.b16 %v488, %v488
      %v521 = vpack.c.b16 %v489, %v489
      %v522 = vpack.c.b16 %v490, %v490
      %v523 = vpack.c.b16 %v491, %v491
      %v524 = vpack.c.b16 %v492, %v492
      %v525 = vpack.c.b16 %v493, %v493
      %v526 = vpack.c.b16 %v494, %v494
      %v527 = vpack.c.b16 %v495, %v495
      %v528 = vpack.c.b16 %v496, %v496
      %v529 = vpack.c.b16 %v497, %v497
      %v530 = vpack.c.b16 %v498, %v498
      %v531 = vpack.c.b16 %v499, %v499
      %v532 = vpack.c.b16 %v500, %v500
      %v533 = vpack.c.b16 %v501, %v501
      %v534 = vpack.c.b16 %v502, %v502
      %v535 = vpack.c.b16 %v503, %v503
      %v536 = vpack.c.b16 %v504, %v504
      %v537 = vpack.c.b16 %v505, %v505
      %v538 = vpack.c.b16 %v506, %v506
      %v539 = vpack.c.b16 %v507, %v507
      %572 = vst [vmem:[%s236] sm:$0xf] %v508
      %573 = vst [vmem:[%s236 + $0x4] sm:$0xf] %v509
      %574 = vst [vmem:[%s236 + $0x8] sm:$0xf] %v510
      %575 = vst [vmem:[%s236 + $0xc] sm:$0xf] %v511
      %576 = vst [vmem:[%s236 + $0x10] sm:$0xf] %v512
      %577 = vst [vmem:[%s236 + $0x14] sm:$0xf] %v513
      %578 = vst [vmem:[%s236 + $0x18] sm:$0xf] %v514
      %579 = vst [vmem:[%s236 + $0x1c] sm:$0xf] %v515
      %580 = vst [vmem:[%s236 + $0x20] sm:$0xf] %v516
      %581 = vst [vmem:[%s236 + $0x24] sm:$0xf] %v517
      %582 = vst [vmem:[%s236 + $0x28] sm:$0xf] %v518
      %583 = vst [vmem:[%s236 + $0x2c] sm:$0xf] %v519
      %584 = vst [vmem:[%s236 + $0x30] sm:$0xf] %v520
      %585 = vst [vmem:[%s236 + $0x34] sm:$0xf] %v521
      %586 = vst [vmem:[%s236 + $0x38] sm:$0xf] %v522
      %587 = vst [vmem:[%s236 + $0x3c] sm:$0xf] %v523
      %588 = vst [vmem:[%s236 + $0x40] sm:$0xf] %v524
      %589 = vst [vmem:[%s236 + $0x44] sm:$0xf] %v525
      %590 = vst [vmem:[%s236 + $0x48] sm:$0xf] %v526
      %591 = vst [vmem:[%s236 + $0x4c] sm:$0xf] %v527
      %592 = vst [vmem:[%s236 + $0x50] sm:$0xf] %v528
      %593 = vst [vmem:[%s236 + $0x54] sm:$0xf] %v529
      %594 = vst [vmem:[%s236 + $0x58] sm:$0xf] %v530
      %595 = vst [vmem:[%s236 + $0x5c] sm:$0xf] %v531
      %596 = vst [vmem:[%s236 + $0x60] sm:$0xf] %v532
      %597 = vst [vmem:[%s236 + $0x64] sm:$0xf] %v533
      %598 = vst [vmem:[%s236 + $0x68] sm:$0xf] %v534
      %599 = vst [vmem:[%s236 + $0x6c] sm:$0xf] %v535
      %600 = vst [vmem:[%s236 + $0x70] sm:$0xf] %v536
      %601 = vst [vmem:[%s236 + $0x74] sm:$0xf] %v537
      %602 = vst [vmem:[%s236 + $0x78] sm:$0xf] %v538
      %603 = vst [vmem:[%s236 + $0x7c] sm:$0xf] %v539
      %s604 = smul.u32 32, %s19
      %p605 = scmp.lt.s32.totalorder %s18, 1
      %s606 = scalar_select %p605, %s18, 1
      %p607 = scmp.lt.s32.totalorder %s604, 63
      %s608 = scalar_select %p607, %s604, 63
      %s609 = smul.addr %s606, 64
      %s610 = sadd.s32 %s608, %s609
      %s611 = smul.addr %s610, 4
      %s612 = scalar_lea.vmem %s3, %s611
      // Predicated region
      $region33: #{_forward_impl.5} parent=31 // pred_check
        %p613 = pneg %p126
      $region34: #{_forward_impl.5} parent=31 // pred_check_branch
        %615 = sbr.rel (%p613) target = $region36
      $region35: #{_forward_impl.5} parent=31 // pred_region
        %s616 = smul.u32 32, %s19
      $region36: #{_forward_impl.5} parent=31 // pred_fallthru
        _
    $region32: #{_forward_impl.5} parent=5 // pred_fallthru
      _
    %p617 = scmp.le.s32.totalorder 2, %s9
    // Predicated region
    $region37: #{_forward_impl.5} parent=5 // pred_check
      %p618 = pneg %p617
    $region38: #{_forward_impl.5} parent=5 // pred_check_branch
      %620 = sbr.rel (%p618) target = $region40
    $region39: #{_forward_impl.5} parent=5 // pred_region
      %s621 = ssub.s32 %s9, 2
      // Predicated region
      $region41: #{_forward_impl.5} parent=39 // pred_check
        %p622 = pneg %p132
      $region42: #{_forward_impl.5} parent=39 // pred_check_branch
        %624 = sbr.rel (%p622) target = $region44
      $region43: #{_forward_impl.5} parent=39 // pred_region
        %s625 = smul.u32 32, %s21
        %p626 = scmp.lt.s32.totalorder %s20, 1
        %s627 = scalar_select %p626, %s20, 1
        %p628 = scmp.lt.s32.totalorder %s625, 63
        %s629 = scalar_select %p628, %s625, 63
        %s630 = smul.addr %s627, 64
        %s631 = sadd.s32 %s629, %s630
        %s632 = smul.addr %s631, 4
        %s633 = scalar_lea.vmem %s3, %s632
      $region44: #{_forward_impl.5} parent=39 // pred_fallthru
        _
    $region40: #{_forward_impl.5} parent=5 // pred_fallthru
      _
  $region6: #{_forward_impl.5} parent=0 // loop_footer
    %s13 = sadd.s32 1, %s9
  $region7: #{_forward_impl.5} parent=0 // loop_footer_branch
    %8 = sbr.rel target = $region3
  $region8: #{_forward_impl.5} parent=0 // loop_exit
    _

// kernel: mul.66
$region0: #{mul.66}
  #allocation0 [shape = 's32[1]{0}', space=sflag, size = 0x4, scoped, tag = 'scoped memory for mul.66']
  %s0 = inlined_call_operand.vmem [shape: f32[2,1,128], index: 0, kind: input, shape index: {}]
  %s1 = inlined_call_operand.vmem [shape: f32[2,1,128], index: 1, kind: input, shape index: {}]
  %s2 = inlined_call_operand.vmem [shape: f32[2,1,128], index: 2, kind: output, shape index: {}]
  %v3 = vld [vmem:[%s0] sm:$0x1]
  %v4 = vld [vmem:[%s1] sm:$0x1]
  %5 = xla_tuple %v3, %v4
  %6 = xla_tuple %5
  %v7 = vmul.f32 %v3, %v4
  %8 = xla_tuple %v7
  %9 = vst [vmem:[%s2] sm:$0x1] %v7
  %s10 = scalar_lea.vmem %s0, 1
  %v11 = vld [vmem:[%s10] sm:$0x1]
  %s12 = scalar_lea.vmem %s1, 1
  %v13 = vld [vmem:[%s12] sm:$0x1]
  %14 = xla_tuple %v11, %v13
  %15 = xla_tuple %14
  %v16 = vmul.f32 %v11, %v13
  %17 = xla_tuple %v16
  %s18 = scalar_lea.vmem %s2, 1
  %19 = vst [vmem:[%s18] sm:$0x1] %v16

// kernel: _forward_impl.7
$region0: #{_forward_impl.7}
  #allocation0 [shape = 'u32[]', space=smem, size = 0x4, offset = 0x4, fixed_abs, tag = 'smem constant byte address 0x4 - core index']
  #allocation1 [shape = 'u32[144,128]{1,0:T(1,128)}', space=vmem, size = 0x12000, scoped, tag = 'internal scratch']
  %s0 = inlined_call_operand.vmem [shape: f32[2,512,128], index: 0, kind: input, shape index: {}]
  %s1 = inlined_call_operand.vmem [shape: f32[2,1,128], index: 1, kind: input, shape index: {}]
  %s2 = inlined_call_operand.vmem [shape: f32[2,1,128], index: 2, kind: input, shape index: {}]
  %s3 = inlined_call_operand.vmem [shape: f32[2,512,128], index: 3, kind: output, shape index: {}]
  %s4 = sld [smem:[#allocation0]]
  $region45: #{_forward_impl.7} parent=0
    _
  %s6 = ssub.s32 1, %s4
  %s7 = scalar_select 0, %s6, %s4
  loop: start=0, step=1, limit=6
  $region2: #{_forward_impl.7} parent=0 // loop_pre_header
    _
  $region3: #{_forward_impl.7} parent=0 // loop_header
    %s9 = sphi 0, %s13
    %p10 = scmp.ge.s32.totalorder %s9, 6
    %s16 = sphi 0, %s28
    %s17 = sphi 0, %s24
    %s18 = sphi 0, %s16
    %s19 = sphi 0, %s17
    %s20 = sphi 0, %s18
    %s21 = sphi 0, %s19
    %s33 = sphi 0, %s35
    %s36 = sphi 0, %s33
    %s37 = sphi 0, %s36
    %s53 = sphi 0, %s37
    %s59 = sphi 0, %s61
    %s62 = sphi 0, %s59
    %s63 = sphi 0, %s62
    %s79 = sphi 0, %s63
    %s85 = sphi 0, %s87
    %s88 = sphi 0, %s85
    %s89 = sphi 0, %s88
    %s105 = sphi 0, %s89
    %s113 = sphi 0, %s115
    %s116 = sphi 0, %s113
    %s117 = sphi 0, %s116
    %s133 = sphi 0, %s117
  $region4: #{_forward_impl.7} parent=0 // loop_header_branch
    %12 = sbr.rel (%p10) target = $region8
  $region5: #{_forward_impl.7} parent=0 // loop_body
    %s14 = ssub.s32 %s9, 1
    %s15 = ssub.s32 %s9, 2
    %s22 = sadd.s32 1, %s17
    %p23 = scmp.ge.s32.totalorder %s22, 2
    %s24 = scalar_select %p23, 0, %s22
    %s25 = sadd.s32 1, %s16
    %s26 = scalar_select %p23, %s25, %s16
    %p27 = scmp.ge.s32.totalorder %s26, 2
    %s28 = scalar_select %p27, 0, %s26
    %s29 = ssub.s32 %s16, %s28
    %s30 = ssub.s32 %s17, %s24
    %s31 = sor.u32 %s29, %s30
    %p32 = scmp.eq.s32.totalorder %s31, 0
    %s34 = sadd.s32 %s33, 1
    %s35 = scalar_select %p32, %s33, %s34
    %p38 = pneg %p32
    %p39 = scmp.eq.s32.totalorder %s9, 3
    %p40 = por %p38, %p39
    %p41 = scmp.ne.s32.totalorder %s33, %s36
    %p42 = scmp.eq.s32.totalorder %s9, 0
    %p43 = por %p41, %p42
    %p44 = scmp.ne.s32.totalorder %s33, %s36
    %p45 = scmp.eq.s32.totalorder %s14, 3
    %p46 = por %p44, %p45
    %p47 = scmp.ne.s32.totalorder %s36, %s37
    %p48 = scmp.eq.s32.totalorder %s14, 0
    %p49 = por %p47, %p48
    %p50 = scmp.ne.s32.totalorder %s36, %s37
    %p51 = scmp.eq.s32.totalorder %s15, 3
    %p52 = por %p50, %p51
    %p54 = scmp.ne.s32.totalorder %s37, %s53
    %p55 = scmp.eq.s32.totalorder %s15, 0
    %p56 = por %p54, %p55
    %s57 = ssub.s32 %s16, %s28
    %p58 = scmp.eq.s32.totalorder %s57, 0
    %s60 = sadd.s32 %s59, 1
    %s61 = scalar_select %p58, %s59, %s60
    %p64 = pneg %p58
    %p65 = scmp.eq.s32.totalorder %s9, 3
    %p66 = por %p64, %p65
    %p67 = scmp.ne.s32.totalorder %s59, %s62
    %p68 = scmp.eq.s32.totalorder %s9, 0
    %p69 = por %p67, %p68
    %p70 = scmp.ne.s32.totalorder %s59, %s62
    %p71 = scmp.eq.s32.totalorder %s14, 3
    %p72 = por %p70, %p71
    %p73 = scmp.ne.s32.totalorder %s62, %s63
    %p74 = scmp.eq.s32.totalorder %s14, 0
    %p75 = por %p73, %p74
    %p76 = scmp.ne.s32.totalorder %s62, %s63
    %p77 = scmp.eq.s32.totalorder %s15, 3
    %p78 = por %p76, %p77
    %p80 = scmp.ne.s32.totalorder %s63, %s79
    %p81 = scmp.eq.s32.totalorder %s15, 0
    %p82 = por %p80, %p81
    %s83 = ssub.s32 %s16, %s28
    %p84 = scmp.eq.s32.totalorder %s83, 0
    %s86 = sadd.s32 %s85, 1
    %s87 = scalar_select %p84, %s85, %s86
    %p90 = pneg %p84
    %p91 = scmp.eq.s32.totalorder %s9, 3
    %p92 = por %p90, %p91
    %p93 = scmp.ne.s32.totalorder %s85, %s88
    %p94 = scmp.eq.s32.totalorder %s9, 0
    %p95 = por %p93, %p94
    %p96 = scmp.ne.s32.totalorder %s85, %s88
    %p97 = scmp.eq.s32.totalorder %s14, 3
    %p98 = por %p96, %p97
    %p99 = scmp.ne.s32.totalorder %s88, %s89
    %p100 = scmp.eq.s32.totalorder %s14, 0
    %p101 = por %p99, %p100
    %p102 = scmp.ne.s32.totalorder %s88, %s89
    %p103 = scmp.eq.s32.totalorder %s15, 3
    %p104 = por %p102, %p103
    %p106 = scmp.ne.s32.totalorder %s89, %s105
    %p107 = scmp.eq.s32.totalorder %s15, 0
    %p108 = por %p106, %p107
    %s109 = ssub.s32 %s16, %s28
    %s110 = ssub.s32 %s17, %s24
    %s111 = sor.u32 %s109, %s110
    %p112 = scmp.eq.s32.totalorder %s111, 0
    %s114 = sadd.s32 %s113, 1
    %s115 = scalar_select %p112, %s113, %s114
    %p118 = pneg %p112
    %p119 = scmp.eq.s32.totalorder %s9, 3
    %p120 = por %p118, %p119
    %p121 = scmp.ne.s32.totalorder %s113, %s116
    %p122 = scmp.eq.s32.totalorder %s9, 0
    %p123 = por %p121, %p122
    %p124 = scmp.ne.s32.totalorder %s113, %s116
    %p125 = scmp.eq.s32.totalorder %s14, 3
    %p126 = por %p124, %p125
    %p127 = scmp.ne.s32.totalorder %s116, %s117
    %p128 = scmp.eq.s32.totalorder %s14, 0
    %p129 = por %p127, %p128
    %p130 = scmp.ne.s32.totalorder %s116, %s117
    %p131 = scmp.eq.s32.totalorder %s15, 3
    %p132 = por %p130, %p131
    %p134 = scmp.ne.s32.totalorder %s117, %s133
    %p135 = scmp.eq.s32.totalorder %s15, 0
    %p136 = por %p134, %p135
    %p137 = scmp.le.s32.totalorder 1, %s9
    %p138 = scmp.lt.s32.totalorder %s9, 5
    %p139 = pnand %p137, %p138
    %p140 = pneg %p139
    // Predicated region
    $region9: #{_forward_impl.7} parent=5 // pred_check
      _
    $region10: #{_forward_impl.7} parent=5 // pred_check_branch
      %142 = sbr.rel (%p139) target = $region12
    $region11: #{_forward_impl.7} parent=5 // pred_region
      %s143 = ssub.s32 %s9, 1
    $region12: #{_forward_impl.7} parent=5 // pred_fallthru
      _
    %p144 = scmp.lt.s32.totalorder %s9, 4
    // Predicated region
    $region13: #{_forward_impl.7} parent=5 // pred_check
      %p145 = pneg %p144
    $region14: #{_forward_impl.7} parent=5 // pred_check_branch
      %147 = sbr.rel (%p145) target = $region16
    $region15: #{_forward_impl.7} parent=5 // pred_region
      // Predicated region
      $region17: #{_forward_impl.7} parent=15 // pred_check
        %p148 = pneg %p43
      $region18: #{_forward_impl.7} parent=15 // pred_check_branch
        %150 = sbr.rel (%p148) target = $region20
      $region19: #{_forward_impl.7} parent=15 // pred_region
        %s151 = smul.u32 32, %s17
        %p152 = scmp.lt.s32.totalorder %s16, 1
        %s153 = scalar_select %p152, %s16, 1
        %p154 = scmp.lt.s32.totalorder %s151, 63
        %s155 = scalar_select %p154, %s151, 63
        %s156 = smul.addr %s153, 64
        %s157 = sadd.s32 %s155, %s156
        %s158 = smul.addr %s157, 8
        %s159 = scalar_lea.vmem %s0, %s158
        %s160 = smul.u32 32, %s17
      $region20: #{_forward_impl.7} parent=15 // pred_fallthru
        _
      // Predicated region
      $region21: #{_forward_impl.7} parent=15 // pred_check
        %p161 = pneg %p69
      $region22: #{_forward_impl.7} parent=15 // pred_check_branch
        %163 = sbr.rel (%p161) target = $region24
      $region23: #{_forward_impl.7} parent=15 // pred_region
        %p164 = scmp.lt.s32.totalorder %s16, 1
        %s165 = scalar_select %p164, %s16, 1
        %s166 = scalar_lea.vmem %s1, %s165
      $region24: #{_forward_impl.7} parent=15 // pred_fallthru
        _
      // Predicated region
      $region25: #{_forward_impl.7} parent=15 // pred_check
        %p167 = pneg %p95
      $region26: #{_forward_impl.7} parent=15 // pred_check_branch
        %169 = sbr.rel (%p167) target = $region28
      $region27: #{_forward_impl.7} parent=15 // pred_region
        %p170 = scmp.lt.s32.totalorder %s16, 1
        %s171 = scalar_select %p170, %s16, 1
        %s172 = scalar_lea.vmem %s2, %s171
      $region28: #{_forward_impl.7} parent=15 // pred_fallthru
        _
    $region16: #{_forward_impl.7} parent=5 // pred_fallthru
      _
    %p173 = scmp.le.s32.totalorder 1, %s9
    %p174 = scmp.lt.s32.totalorder %s9, 5
    %p175 = pnand %p173, %p174
    %p176 = pneg %p175
    // Predicated region
    $region29: #{_forward_impl.7} parent=5 // pred_check
      _
    $region30: #{_forward_impl.7} parent=5 // pred_check_branch
      %178 = sbr.rel (%p175) target = $region32
    $region31: #{_forward_impl.7} parent=5 // pred_region
      %s179 = ssub.s32 %s9, 1
      %s180 = smul.u32 32, %s19
      %p181 = scmp.lt.s32.totalorder %s18, 1
      %s182 = scalar_select %p181, %s18, 1
      %p183 = scmp.lt.s32.totalorder %s180, 63
      %s184 = scalar_select %p183, %s180, 63
      %s185 = smul.addr %s182, 64
      %s186 = sadd.s32 %s184, %s185
      %s187 = smul.addr %s186, 8
      %s188 = scalar_lea.vmem %s0, %s187
      %p189 = pneg %p49
      %p190 = pneg %p46
      %p191 = scmp.lt.s32.totalorder %s18, 1
      %s192 = scalar_select %p191, %s18, 1
      %s193 = scalar_lea.vmem %s1, %s192
      %p194 = pneg %p75
      %p195 = pneg %p72
      %p196 = scmp.lt.s32.totalorder %s18, 1
      %s197 = scalar_select %p196, %s18, 1
      %s198 = scalar_lea.vmem %s2, %s197
      %p199 = pneg %p101
      %p200 = pneg %p98
      %p201 = pneg %p129
      %p202 = pneg %p126
      %s203 = smul.u32 32, %s19
      %p204 = scmp.lt.s32.totalorder %s18, 1
      %s205 = scalar_select %p204, %s18, 1
      %p206 = scmp.lt.s32.totalorder %s203, 63
      %s207 = scalar_select %p206, %s203, 63
      %s208 = smul.addr %s205, 64
      %s209 = sadd.s32 %s207, %s208
      %s210 = smul.addr %s209, 8
      %s211 = scalar_lea.vmem %s3, %s210
      %s212 = smul.u32 32, %s19
      %p213 = scmp.lt.s32.totalorder %s18, 1
      %s214 = scalar_select %p213, %s18, 1
      %p215 = scmp.lt.s32.totalorder %s212, 63
      %s216 = scalar_select %p215, %s212, 63
      %s217 = smul.addr %s214, 64
      %s218 = sadd.s32 %s216, %s217
      %s219 = smul.addr %s218, 8
      %s220 = scalar_lea.vmem %s0, %s219
      %s221 = smul.u32 32, %s19
      %p222 = scmp.lt.s32.totalorder %s18, 1
      %s223 = scalar_select %p222, %s18, 1
      %s224 = scalar_lea.vmem %s1, %s223
      %p225 = scmp.lt.s32.totalorder %s18, 1
      %s226 = scalar_select %p225, %s18, 1
      %s227 = scalar_lea.vmem %s2, %s226
      %s228 = smul.u32 32, %s19
      %p229 = scmp.lt.s32.totalorder %s18, 1
      %s230 = scalar_select %p229, %s18, 1
      %p231 = scmp.lt.s32.totalorder %s228, 63
      %s232 = scalar_select %p231, %s228, 63
      %s233 = smul.addr %s230, 64
      %s234 = sadd.s32 %s232, %s233
      %s235 = smul.addr %s234, 8
      %s236 = scalar_lea.vmem %s3, %s235
      %s237 = smul.u32 32, %s19
      %v238 = vld [vmem:[%s220] sm:$0xff]
      %v239 = vld [vmem:[%s220 + $0x8] sm:$0xff]
      %v240 = vld [vmem:[%s220 + $0x10] sm:$0xff]
      %v241 = vld [vmem:[%s220 + $0x18] sm:$0xff]
      %v242 = vld [vmem:[%s220 + $0x20] sm:$0xff]
      %v243 = vld [vmem:[%s220 + $0x28] sm:$0xff]
      %v244 = vld [vmem:[%s220 + $0x30] sm:$0xff]
      %v245 = vld [vmem:[%s220 + $0x38] sm:$0xff]
      %v246 = vld [vmem:[%s220 + $0x40] sm:$0xff]
      %v247 = vld [vmem:[%s220 + $0x48] sm:$0xff]
      %v248 = vld [vmem:[%s220 + $0x50] sm:$0xff]
      %v249 = vld [vmem:[%s220 + $0x58] sm:$0xff]
      %v250 = vld [vmem:[%s220 + $0x60] sm:$0xff]
      %v251 = vld [vmem:[%s220 + $0x68] sm:$0xff]
      %v252 = vld [vmem:[%s220 + $0x70] sm:$0xff]
      %v253 = vld [vmem:[%s220 + $0x78] sm:$0xff]
      %v254 = vld [vmem:[%s220 + $0x80] sm:$0xff]
      %v255 = vld [vmem:[%s220 + $0x88] sm:$0xff]
      %v256 = vld [vmem:[%s220 + $0x90] sm:$0xff]
      %v257 = vld [vmem:[%s220 + $0x98] sm:$0xff]
      %v258 = vld [vmem:[%s220 + $0xa0] sm:$0xff]
      %v259 = vld [vmem:[%s220 + $0xa8] sm:$0xff]
      %v260 = vld [vmem:[%s220 + $0xb0] sm:$0xff]
      %v261 = vld [vmem:[%s220 + $0xb8] sm:$0xff]
      %v262 = vld [vmem:[%s220 + $0xc0] sm:$0xff]
      %v263 = vld [vmem:[%s220 + $0xc8] sm:$0xff]
      %v264 = vld [vmem:[%s220 + $0xd0] sm:$0xff]
      %v265 = vld [vmem:[%s220 + $0xd8] sm:$0xff]
      %v266 = vld [vmem:[%s220 + $0xe0] sm:$0xff]
      %v267 = vld [vmem:[%s220 + $0xe8] sm:$0xff]
      %v268 = vld [vmem:[%s220 + $0xf0] sm:$0xff]
      %v269 = vld [vmem:[%s220 + $0xf8] sm:$0xff]
      %v270 = vld [vmem:[%s224] sm:$0x1]
      %v272 = vlaneseq
      %v273 = vshrl.u32 %v272, 7
      %v274 = vsub.s32 0, %v273
      %v275 = vrot.slane %v270, %v274
      %v277 = vmul.f32 %v238, %v275
      %v278 = vmul.f32 %v239, %v275
      %v279 = vmul.f32 %v240, %v275
      %v280 = vmul.f32 %v241, %v275
      %v281 = vmul.f32 %v242, %v275
      %v282 = vmul.f32 %v243, %v275
      %v283 = vmul.f32 %v244, %v275
      %v284 = vmul.f32 %v245, %v275
      %v285 = vmul.f32 %v246, %v275
      %v286 = vmul.f32 %v247, %v275
      %v287 = vmul.f32 %v248, %v275
      %v288 = vmul.f32 %v249, %v275
      %v289 = vmul.f32 %v250, %v275
      %v290 = vmul.f32 %v251, %v275
      %v291 = vmul.f32 %v252, %v275
      %v292 = vmul.f32 %v253, %v275
      %v293 = vmul.f32 %v254, %v275
      %v294 = vmul.f32 %v255, %v275
      %v295 = vmul.f32 %v256, %v275
      %v296 = vmul.f32 %v257, %v275
      %v297 = vmul.f32 %v258, %v275
      %v298 = vmul.f32 %v259, %v275
      %v299 = vmul.f32 %v260, %v275
      %v300 = vmul.f32 %v261, %v275
      %v301 = vmul.f32 %v262, %v275
      %v302 = vmul.f32 %v263, %v275
      %v303 = vmul.f32 %v264, %v275
      %v304 = vmul.f32 %v265, %v275
      %v305 = vmul.f32 %v266, %v275
      %v306 = vmul.f32 %v267, %v275
      %v307 = vmul.f32 %v268, %v275
      %v308 = vmul.f32 %v269, %v275
      %v309 = vld [vmem:[%s227] sm:$0x1]
      %v311 = vlaneseq
      %v312 = vshrl.u32 %v311, 7
      %v313 = vsub.s32 0, %v312
      %v314 = vrot.slane %v309, %v313
      %v316 = vadd.f32 %v277, %v314
      %v317 = vadd.f32 %v278, %v314
      %v318 = vadd.f32 %v279, %v314
      %v319 = vadd.f32 %v280, %v314
      %v320 = vadd.f32 %v281, %v314
      %v321 = vadd.f32 %v282, %v314
      %v322 = vadd.f32 %v283, %v314
      %v323 = vadd.f32 %v284, %v314
      %v324 = vadd.f32 %v285, %v314
      %v325 = vadd.f32 %v286, %v314
      %v326 = vadd.f32 %v287, %v314
      %v327 = vadd.f32 %v288, %v314
      %v328 = vadd.f32 %v289, %v314
      %v329 = vadd.f32 %v290, %v314
      %v330 = vadd.f32 %v291, %v314
      %v331 = vadd.f32 %v292, %v314
      %v332 = vadd.f32 %v293, %v314
      %v333 = vadd.f32 %v294, %v314
      %v334 = vadd.f32 %v295, %v314
      %v335 = vadd.f32 %v296, %v314
      %v336 = vadd.f32 %v297, %v314
      %v337 = vadd.f32 %v298, %v314
      %v338 = vadd.f32 %v299, %v314
      %v339 = vadd.f32 %v300, %v314
      %v340 = vadd.f32 %v301, %v314
      %v341 = vadd.f32 %v302, %v314
      %v342 = vadd.f32 %v303, %v314
      %v343 = vadd.f32 %v304, %v314
      %v344 = vadd.f32 %v305, %v314
      %v345 = vadd.f32 %v306, %v314
      %v346 = vadd.f32 %v307, %v314
      %v347 = vadd.f32 %v308, %v314
      %vm348 = vcmp.ge.f32.partialorder %v316, 0.0
      %vm349 = vcmp.ge.f32.partialorder %v317, 0.0
      %vm350 = vcmp.ge.f32.partialorder %v318, 0.0
      %vm351 = vcmp.ge.f32.partialorder %v319, 0.0
      %vm352 = vcmp.ge.f32.partialorder %v320, 0.0
      %vm353 = vcmp.ge.f32.partialorder %v321, 0.0
      %vm354 = vcmp.ge.f32.partialorder %v322, 0.0
      %vm355 = vcmp.ge.f32.partialorder %v323, 0.0
      %vm356 = vcmp.ge.f32.partialorder %v324, 0.0
      %vm357 = vcmp.ge.f32.partialorder %v325, 0.0
      %vm358 = vcmp.ge.f32.partialorder %v326, 0.0
      %vm359 = vcmp.ge.f32.partialorder %v327, 0.0
      %vm360 = vcmp.ge.f32.partialorder %v328, 0.0
      %vm361 = vcmp.ge.f32.partialorder %v329, 0.0
      %vm362 = vcmp.ge.f32.partialorder %v330, 0.0
      %vm363 = vcmp.ge.f32.partialorder %v331, 0.0
      %vm364 = vcmp.ge.f32.partialorder %v332, 0.0
      %vm365 = vcmp.ge.f32.partialorder %v333, 0.0
      %vm366 = vcmp.ge.f32.partialorder %v334, 0.0
      %vm367 = vcmp.ge.f32.partialorder %v335, 0.0
      %vm368 = vcmp.ge.f32.partialorder %v336, 0.0
      %vm369 = vcmp.ge.f32.partialorder %v337, 0.0
      %vm370 = vcmp.ge.f32.partialorder %v338, 0.0
      %vm371 = vcmp.ge.f32.partialorder %v339, 0.0
      %vm372 = vcmp.ge.f32.partialorder %v340, 0.0
      %vm373 = vcmp.ge.f32.partialorder %v341, 0.0
      %vm374 = vcmp.ge.f32.partialorder %v342, 0.0
      %vm375 = vcmp.ge.f32.partialorder %v343, 0.0
      %vm376 = vcmp.ge.f32.partialorder %v344, 0.0
      %vm377 = vcmp.ge.f32.partialorder %v345, 0.0
      %vm378 = vcmp.ge.f32.partialorder %v346, 0.0
      %vm379 = vcmp.ge.f32.partialorder %v347, 0.0
      %v380 = vmul.f32 %v316, 0.01
      %v381 = vmul.f32 %v317, 0.01
      %v382 = vmul.f32 %v318, 0.01
      %v383 = vmul.f32 %v319, 0.01
      %v384 = vmul.f32 %v320, 0.01
      %v385 = vmul.f32 %v321, 0.01
      %v386 = vmul.f32 %v322, 0.01
      %v387 = vmul.f32 %v323, 0.01
      %v388 = vmul.f32 %v324, 0.01
      %v389 = vmul.f32 %v325, 0.01
      %v390 = vmul.f32 %v326, 0.01
      %v391 = vmul.f32 %v327, 0.01
      %v392 = vmul.f32 %v328, 0.01
      %v393 = vmul.f32 %v329, 0.01
      %v394 = vmul.f32 %v330, 0.01
      %v395 = vmul.f32 %v331, 0.01
      %v396 = vmul.f32 %v332, 0.01
      %v397 = vmul.f32 %v333, 0.01
      %v398 = vmul.f32 %v334, 0.01
      %v399 = vmul.f32 %v335, 0.01
      %v400 = vmul.f32 %v336, 0.01
      %v401 = vmul.f32 %v337, 0.01
      %v402 = vmul.f32 %v338, 0.01
      %v403 = vmul.f32 %v339, 0.01
      %v404 = vmul.f32 %v340, 0.01
      %v405 = vmul.f32 %v341, 0.01
      %v406 = vmul.f32 %v342, 0.01
      %v407 = vmul.f32 %v343, 0.01
      %v408 = vmul.f32 %v344, 0.01
      %v409 = vmul.f32 %v345, 0.01
      %v410 = vmul.f32 %v346, 0.01
      %v411 = vmul.f32 %v347, 0.01
      %v412 = vsel %vm348, %v316, %v380
      %v413 = vsel %vm349, %v317, %v381
      %v414 = vsel %vm350, %v318, %v382
      %v415 = vsel %vm351, %v319, %v383
      %v416 = vsel %vm352, %v320, %v384
      %v417 = vsel %vm353, %v321, %v385
      %v418 = vsel %vm354, %v322, %v386
      %v419 = vsel %vm355, %v323, %v387
      %v420 = vsel %vm356, %v324, %v388
      %v421 = vsel %vm357, %v325, %v389
      %v422 = vsel %vm358, %v326, %v390
      %v423 = vsel %vm359, %v327, %v391
      %v424 = vsel %vm360, %v328, %v392
      %v425 = vsel %vm361, %v329, %v393
      %v426 = vsel %vm362, %v330, %v394
      %v427 = vsel %vm363, %v331, %v395
      %v428 = vsel %vm364, %v332, %v396
      %v429 = vsel %vm365, %v333, %v397
      %v430 = vsel %vm366, %v334, %v398
      %v431 = vsel %vm367, %v335, %v399
      %v432 = vsel %vm368, %v336, %v400
      %v433 = vsel %vm369, %v337, %v401
      %v434 = vsel %vm370, %v338, %v402
      %v435 = vsel %vm371, %v339, %v403
      %v436 = vsel %vm372, %v340, %v404
      %v437 = vsel %vm373, %v341, %v405
      %v438 = vsel %vm374, %v342, %v406
      %v439 = vsel %vm375, %v343, %v407
      %v440 = vsel %vm376, %v344, %v408
      %v441 = vsel %vm377, %v345, %v409
      %v442 = vsel %vm378, %v346, %v410
      %v443 = vsel %vm379, %v347, %v411
      %444 = vst [vmem:[%s236] sm:$0xff] %v412
      %445 = vst [vmem:[%s236 + $0x8] sm:$0xff] %v413
      %446 = vst [vmem:[%s236 + $0x10] sm:$0xff] %v414
      %447 = vst [vmem:[%s236 + $0x18] sm:$0xff] %v415
      %448 = vst [vmem:[%s236 + $0x20] sm:$0xff] %v416
      %449 = vst [vmem:[%s236 + $0x28] sm:$0xff] %v417
      %450 = vst [vmem:[%s236 + $0x30] sm:$0xff] %v418
      %451 = vst [vmem:[%s236 + $0x38] sm:$0xff] %v419
      %452 = vst [vmem:[%s236 + $0x40] sm:$0xff] %v420
      %453 = vst [vmem:[%s236 + $0x48] sm:$0xff] %v421
      %454 = vst [vmem:[%s236 + $0x50] sm:$0xff] %v422
      %455 = vst [vmem:[%s236 + $0x58] sm:$0xff] %v423
      %456 = vst [vmem:[%s236 + $0x60] sm:$0xff] %v424
      %457 = vst [vmem:[%s236 + $0x68] sm:$0xff] %v425
      %458 = vst [vmem:[%s236 + $0x70] sm:$0xff] %v426
      %459 = vst [vmem:[%s236 + $0x78] sm:$0xff] %v427
      %460 = vst [vmem:[%s236 + $0x80] sm:$0xff] %v428
      %461 = vst [vmem:[%s236 + $0x88] sm:$0xff] %v429
      %462 = vst [vmem:[%s236 + $0x90] sm:$0xff] %v430
      %463 = vst [vmem:[%s236 + $0x98] sm:$0xff] %v431
      %464 = vst [vmem:[%s236 + $0xa0] sm:$0xff] %v432
      %465 = vst [vmem:[%s236 + $0xa8] sm:$0xff] %v433
      %466 = vst [vmem:[%s236 + $0xb0] sm:$0xff] %v434
      %467 = vst [vmem:[%s236 + $0xb8] sm:$0xff] %v435
      %468 = vst [vmem:[%s236 + $0xc0] sm:$0xff] %v436
      %469 = vst [vmem:[%s236 + $0xc8] sm:$0xff] %v437
      %470 = vst [vmem:[%s236 + $0xd0] sm:$0xff] %v438
      %471 = vst [vmem:[%s236 + $0xd8] sm:$0xff] %v439
      %472 = vst [vmem:[%s236 + $0xe0] sm:$0xff] %v440
      %473 = vst [vmem:[%s236 + $0xe8] sm:$0xff] %v441
      %474 = vst [vmem:[%s236 + $0xf0] sm:$0xff] %v442
      %475 = vst [vmem:[%s236 + $0xf8] sm:$0xff] %v443
      %s476 = smul.u32 32, %s19
      %p477 = scmp.lt.s32.totalorder %s18, 1
      %s478 = scalar_select %p477, %s18, 1
      %p479 = scmp.lt.s32.totalorder %s476, 63
      %s480 = scalar_select %p479, %s476, 63
      %s481 = smul.addr %s478, 64
      %s482 = sadd.s32 %s480, %s481
      %s483 = smul.addr %s482, 8
      %s484 = scalar_lea.vmem %s3, %s483
      // Predicated region
      $region33: #{_forward_impl.7} parent=31 // pred_check
        %p485 = pneg %p126
      $region34: #{_forward_impl.7} parent=31 // pred_check_branch
        %487 = sbr.rel (%p485) target = $region36
      $region35: #{_forward_impl.7} parent=31 // pred_region
        %s488 = smul.u32 32, %s19
      $region36: #{_forward_impl.7} parent=31 // pred_fallthru
        _
    $region32: #{_forward_impl.7} parent=5 // pred_fallthru
      _
    %p489 = scmp.le.s32.totalorder 2, %s9
    // Predicated region
    $region37: #{_forward_impl.7} parent=5 // pred_check
      %p490 = pneg %p489
    $region38: #{_forward_impl.7} parent=5 // pred_check_branch
      %492 = sbr.rel (%p490) target = $region40
    $region39: #{_forward_impl.7} parent=5 // pred_region
      %s493 = ssub.s32 %s9, 2
      // Predicated region
      $region41: #{_forward_impl.7} parent=39 // pred_check
        %p494 = pneg %p132
      $region42: #{_forward_impl.7} parent=39 // pred_check_branch
        %496 = sbr.rel (%p494) target = $region44
      $region43: #{_forward_impl.7} parent=39 // pred_region
        %s497 = smul.u32 32, %s21
        %p498 = scmp.lt.s32.totalorder %s20, 1
        %s499 = scalar_select %p498, %s20, 1
        %p500 = scmp.lt.s32.totalorder %s497, 63
        %s501 = scalar_select %p500, %s497, 63
        %s502 = smul.addr %s499, 64
        %s503 = sadd.s32 %s501, %s502
        %s504 = smul.addr %s503, 8
        %s505 = scalar_lea.vmem %s3, %s504
      $region44: #{_forward_impl.7} parent=39 // pred_fallthru
        _
    $region40: #{_forward_impl.7} parent=5 // pred_fallthru
      _
  $region6: #{_forward_impl.7} parent=0 // loop_footer
    %s13 = sadd.s32 1, %s9
  $region7: #{_forward_impl.7} parent=0 // loop_footer_branch
    %8 = sbr.rel target = $region3
  $region8: #{_forward_impl.7} parent=0 // loop_exit
    _

</llo_original>
